<compile_context>
chip_gen: v7x
topology: tpu7x:2x2x1
jax: 0.10.0
libtpu: 0.0.40
codegen_flags: <defaults>
</compile_context>

<pallas_src>
import functools
import math

import jax
import jax.numpy as jnp
from jax import lax
from jax.experimental import pallas as pl
from jax.experimental.pallas import tpu as pltpu


def _round_up(a, m):
    return -(-a // m) * m


# ----------------------------------------------------------------------------
# Glue: hann window and linear interpolation of the filter trajectories
# (F.interpolate, linear, align_corners=True) sampled at the frame indices the
# overlap-add loop actually uses (index i // hop = k).
# ----------------------------------------------------------------------------
def hann_window(frame_size):
    # torch.hann_window default (periodic=True)
    n = jnp.arange(frame_size, dtype=jnp.float32)
    return 0.5 - 0.5 * jnp.cos(2.0 * jnp.pi * n / frame_size)


def interp_filters_at_frames(filter_coeffs, frame_size, num_frames):
    """filter_coeffs: [B, N, T] -> per-frame filters [num_frames, B, N]."""
    B, N, T = filter_coeffs.shape
    L = T * frame_size                      # interpolation target length
    k = jnp.arange(num_frames, dtype=jnp.float32)
    scale = (T - 1) / (L - 1) if L > 1 else 0.0
    x = k * scale
    idx0 = jnp.clip(jnp.floor(x).astype(jnp.int32), 0, T - 1)
    idx1 = jnp.clip(idx0 + 1, 0, T - 1)
    frac = x - idx0.astype(jnp.float32)
    f0 = filter_coeffs[:, :, idx0]          # [B, N, K]
    f1 = filter_coeffs[:, :, idx1]          # [B, N, K]
    fk = (1.0 - frac) * f0 + frac * f1      # [B, N, K]
    return jnp.transpose(fk, (2, 0, 1)).astype(jnp.float32)  # [K, B, N]


# ----------------------------------------------------------------------------
# Pallas kernel: one grid step = one disjoint output chunk of G*hop samples.
# ----------------------------------------------------------------------------
def make_kernel(batch, G, R, hop, frame_size, n_taps, pad):
    B = batch
    F = frame_size
    n_frames = G + 1   # frames touching this chunk

    def kernel(src_ref, halo_ref, filt_ref, win_ref, out_ref,
               sbuf_ref, fbuf_ref, ybuf_ref):
        # src_ref : [B, G*hop]        disjoint main source window for this chunk
        # halo_ref: [B, halo_w]       first lanes of the NEXT window (one-frame halo)
        # filt_ref: [R, N]            per-(frame,batch) filters, row f*B+b (zero-padded)
        # win_ref : [1, F]            hann window
        # out_ref : [B, G*hop]        disjoint output chunk (lane-dense)
        # sbuf_ref: [B, G*hop+F]      stitched chunk source
        # fbuf_ref: [R, F+2*pad]      windowed, zero-padded frame slab
        # ybuf_ref: [R, F]            filtered + synthesis-windowed frame slab

        # Hoisted window broadcasts (JAX does not CSE broadcast_in_dim).
        win_b = jnp.broadcast_to(win_ref[...], (B, F))
        win_r = jnp.broadcast_to(win_ref[...], (R, F))

        # Stitch main window + halo into one per-chunk source buffer.
        sbuf_ref[:, :G * hop] = src_ref[...]
        sbuf_ref[:, G * hop:G * hop + F] = halo_ref[:, :F]

        # Frame slab: rows are (frame, batch) pairs -> full sublanes even at
        # small batch.  Zero once per chunk (FIR pad strips stay zero), then
        # write the windowed analysis frames into the centre.
        fbuf_ref[...] = jnp.zeros_like(fbuf_ref)
        for f in range(n_frames):
            fbuf_ref[f * B:(f + 1) * B, pad:pad + F] = (
                sbuf_ref[:, f * hop:f * hop + F] * win_b)

        # FIR == F.conv1d cross-correlation with padding = n_taps // 2, over the
        # whole slab at once:  conv[r, j] = sum_n filt[r, n] * fbuf[r, j + n].
        # Ref slices (not value slices) keep each tap shift on the vld path.
        conv = jnp.zeros((R, F), jnp.float32)
        if n_taps <= 64:
            for n in range(n_taps):                       # static unroll (small N)
                conv = conv + filt_ref[:, n:n + 1] * fbuf_ref[:, n:n + F]
        else:
            # Production-size taps (N ~ 512): bounded live ranges, modest unroll.
            def mac(n, acc):
                w = filt_ref[:, pl.ds(n, 1)]
                x = fbuf_ref[:, pl.ds(n, F)]
                return acc + w * x
            conv = lax.fori_loop(0, n_taps, mac, conv, unroll=8)

        # Synthesis window, then overlap-add.  With hop = F/2 each output
        # hop-segment is (2nd half of frame s) + (1st half of frame s+1);
        # assemble from ref slices and write every output lane exactly once.
        ybuf_ref[...] = conv * win_r
        for s in range(G):
            out_ref[:, s * hop:(s + 1) * hop] = (
                ybuf_ref[s * B:(s + 1) * B, hop:F]
                + ybuf_ref[(s + 1) * B:(s + 2) * B, 0:hop])

    return kernel


@functools.partial(jax.jit, static_argnames=("frame_size",))
def filter_module_forward(source, filter_coeffs, *, frame_size):
    """source: [B, T*frame_size], filter_coeffs: [B, N, T] -> [B, T*frame_size]."""
    source = source.astype(jnp.float32)
    filter_coeffs = filter_coeffs.astype(jnp.float32)

    B, S = source.shape
    _, N, T = filter_coeffs.shape
    assert S == T * frame_size
    assert N % 2 == 1, "odd n_filter_coeffs required (see TODO above)"
    assert frame_size % 2 == 0, "even frame_size required (hop = frame_size // 2)"

    F = frame_size
    hop = F // 2
    pad = N // 2
    K = 2 * T + 2              # frames in the PyTorch loop
    n_useful = 2 * T           # hop-segments of useful (unstripped) output

    # ---- chunk sizing -------------------------------------------------------
    # G*hop must be a multiple of halo_w (itself a multiple of 128) so output
    # stores are lane-dense and the halo block index is integral.
    halo_w = _round_up(F, 128)
    g_align = halo_w // math.gcd(halo_w, hop)
    target_lanes = 1024        # desired per-chunk output width (512-2048 lanes)
    max_slab_rows = 80         # bound the conv-slab vreg pressure
    G = min(max(1, target_lanes // hop), max(1, max_slab_rows // B - 1))
    G = max(g_align, (G // g_align) * g_align)
    G = min(G, _round_up(n_useful, g_align))
    G = max(G, _round_up(2, g_align))          # halo construction needs G >= 2
    C = -(-n_useful // G)
    if C == 1 and n_useful >= 2 * g_align:     # keep both v7x TensorCores busy
        G = _round_up(-(-n_useful // 2), g_align)
        C = -(-n_useful // G)
    R = _round_up((G + 1) * B, 8)              # slab rows, sublane multiple
    bpc = (G * hop) // halo_w                  # halo blocks per main window

    # ---- source: single pad so every chunk window starts 128-aligned --------
    # Chunk c reads padded-source samples [(c*G+1)*hop, (c*G+1)*hop+(G+2)*hop);
    # shifting the padded source left by one hop makes that start c*G*hop.
    total = (C + 1) * G * hop
    src_grid = jnp.pad(source, ((0, 0), (hop, total - hop - S)))

    # ---- per-chunk, per-(frame,batch) filters --------------------------------
    # Chunk c uses frames c*G+1 .. c*G+G+1 (frame 0 only writes the stripped
    # left pad).  Frames >= K are zeroed so ragged/padded chunks add nothing.
    filt_all = interp_filters_at_frames(filter_coeffs, F, K)               # [K,B,N]
    k_ids = jnp.arange(C)[:, None] * G + 1 + jnp.arange(G + 1)[None, :]    # [C,G+1]
    valid = (k_ids < K).astype(jnp.float32)[..., None, None]
    filt_chunks = filt_all[jnp.minimum(k_ids, K - 1)] * valid              # [C,G+1,B,N]
    filt_chunks = filt_chunks.reshape(C, (G + 1) * B, N)
    filt_chunks = jnp.pad(filt_chunks, ((0, 0), (0, R - (G + 1) * B), (0, 0)))

    win = hann_window(F)[None, :]                                          # [1,F]

    kernel = make_kernel(B, G, R, hop, F, N, pad)
    out_chunks = pl.pallas_call(
        kernel,
        out_shape=jax.ShapeDtypeStruct((C, B, G * hop), jnp.float32),
        grid_spec=pltpu.PrefetchScalarGridSpec(
            num_scalar_prefetch=0,
            grid=(C,),
            in_specs=[
                # disjoint main source window: lanes [c*G*hop, (c+1)*G*hop)
                pl.BlockSpec((B, G * hop), lambda c: (0, c)),
                # one-frame halo: first lanes of the NEXT main window (same array)
                pl.BlockSpec((B, halo_w), lambda c: (0, (c + 1) * bpc)),
                # per-(frame, batch) filter slab for this chunk
                pl.BlockSpec((None, R, N), lambda c: (c, 0, 0)),
                # hann window (shared)
                pl.BlockSpec((1, F), lambda c: (0, 0)),
            ],
            out_specs=pl.BlockSpec((None, B, G * hop), lambda c: (c, 0, 0)),
            scratch_shapes=[
                pltpu.VMEM((B, G * hop + F), jnp.float32),     # stitched chunk source
                pltpu.VMEM((R, F + 2 * pad), jnp.float32),     # windowed padded frames
                pltpu.VMEM((R, F), jnp.float32),               # filtered frames
            ],
        ),
        compiler_params=pltpu.CompilerParams(
            # chunks are independent and write disjoint output blocks.
            dimension_semantics=("parallel",),
            # blocks here are tiny (<1 MiB even at N=512, frame_size=80); 32 MiB
            # is within every generation's scoped ceiling (v5e 16 MiB default).
            vmem_limit_bytes=32 * 1024 * 1024,
        ),
    )(src_grid, src_grid, filt_chunks, win)

    out = jnp.transpose(out_chunks, (1, 0, 2)).reshape(B, C * G * hop)
    return out[:, :S]


# ----------------------------------------------------------------------------
# Pure-JAX reference (same math, no Pallas) for verification.
# ----------------------------------------------------------------------------
def reference_forward(source, filter_coeffs, frame_size):
    source = source.astype(jnp.float32)
    filter_coeffs = filter_coeffs.astype(jnp.float32)
    B, S = source.shape
    _, N, T = filter_coeffs.shape
    hop = frame_size // 2
    pad = N // 2
    s_pad = S + 2 * frame_size
    K = (s_pad - frame_size) // hop   # == 2T + 2

    filt_all = interp_filters_at_frames(filter_coeffs, frame_size, K)  # [K, B, N]
    window = hann_window(frame_size)
    src_pad = jnp.pad(source, ((0, 0), (frame_size, frame_size)))
    out = jnp.zeros((B, s_pad), jnp.float32)
    for k in range(K):
        i = k * hop
        frame = src_pad[:, i:i + frame_size] * window                 # [B, F]
        fpad = jnp.pad(frame, ((0, 0), (pad, pad)))                   # [B, F+2p]
        filt = filt_all[k]                                            # [B, N]
        conv = jnp.zeros((B, frame_size), jnp.float32)
        for n in range(N):
            conv = conv + filt[:, n:n + 1] * fpad[:, n:n + frame_size]
        out = out.at[:, i:i + frame_size].add(conv * window)
    return out[:, frame_size:-frame_size]


if __name__ == "__main__":
    key = jax.random.PRNGKey(0)

    # Small synthetic configuration consistent with the module:
    #   n_filter_coeffs=17 (odd), frame_size=16 (e.g. sample_rate=3200, frame_rate=200)
    B = 2
    n_filter_coeffs = 17
    frame_size = 16

    ok = True
    # T=8: aligned single chunk; T=5: ragged chunk (zero-filter tail frames);
    # T=16: multi-chunk path (C >= 2, halo across chunk boundary).
    for T in (8, 5, 16):
        key, k_src, k_filt = jax.random.split(key, 3)
        source = jax.random.normal(k_src, (B, T * frame_size), dtype=jnp.float32)
        filter_coeffs = 0.1 * jax.random.normal(
            k_filt, (B, n_filter_coeffs, T), dtype=jnp.float32)

        out = filter_module_forward(source, filter_coeffs, frame_size=frame_size)
        out = jax.block_until_ready(out)
        assert out.shape == (B, T * frame_size)

        ref = reference_forward(source, filter_coeffs, frame_size)
        max_err = float(jnp.max(jnp.abs(out - ref)))
        if max_err > 1e-4:
            ok = False
            print(f"MISMATCH T={T} max_abs_err={max_err}")

    if ok:
        print("KERNEL_OK")
</pallas_src>

<mosaic_0001>
module attributes {stable_mosaic.version = 11 : i64} {
  func.func @kernel(%arg0: i32, %arg1: memref<2x128xf32, #tpu.memory_space<vmem>>, %arg2: memref<2x128xf32, #tpu.memory_space<vmem>>, %arg3: memref<1x40x17xf32, #tpu.memory_space<vmem>>, %arg4: memref<1x16xf32, #tpu.memory_space<vmem>>, %arg5: memref<1x2x128xf32, #tpu.memory_space<vmem>>, %arg6: memref<2x144xf32, #tpu.memory_space<vmem>>, %arg7: memref<40x32xf32, #tpu.memory_space<vmem>>, %arg8: memref<40x16xf32, #tpu.memory_space<vmem>>) attributes {dimension_semantics = [#tpu.dimension_semantics<parallel>], iteration_bounds = array<i64: 1>, scalar_prefetch = 0 : i64, scratch_operands = 3 : i64, tpu.core_type = #tpu.core_type<tc>, window_params = [{transform_indices = @transform_0, window_bounds = array<i64: 2, 128>}, {transform_indices = @transform_1, window_bounds = array<i64: 2, 128>}, {transform_indices = @transform_2, window_bounds = array<i64: 1, 40, 17>}, {pipeline_mode = #tpu.pipeline_mode<synchronous>, transform_indices = @transform_3, window_bounds = array<i64: 1, 16>}, {transform_indices = @transform_4, window_bounds = array<i64: 1, 2, 128>}]} {
    %c0 = arith.constant 0 : index
    %c0_0 = arith.constant 0 : index
    %0 = vector.load %arg4[%c0, %c0_0] : memref<1x16xf32, #tpu.memory_space<vmem>>, vector<1x16xf32>
    %1 = vector.shape_cast %0 : vector<1x16xf32> to vector<1x16xf32>
    %2 = vector.broadcast %1 : vector<1x16xf32> to vector<2x16xf32>
    %c0_1 = arith.constant 0 : index
    %c0_2 = arith.constant 0 : index
    %3 = vector.load %arg4[%c0_1, %c0_2] : memref<1x16xf32, #tpu.memory_space<vmem>>, vector<1x16xf32>
    %4 = vector.shape_cast %3 : vector<1x16xf32> to vector<1x16xf32>
    %5 = vector.broadcast %4 : vector<1x16xf32> to vector<40x16xf32>
    %c0_3 = arith.constant 0 : index
    %c0_4 = arith.constant 0 : index
    %6 = vector.load %arg1[%c0_3, %c0_4] : memref<2x128xf32, #tpu.memory_space<vmem>>, vector<2x128xf32>
    %c0_5 = arith.constant 0 : index
    %c0_6 = arith.constant 0 : index
    %7 = vector.load %arg6[%c0_5, %c0_6] : memref<2x144xf32, #tpu.memory_space<vmem>>, vector<2x128xf32>
    tpu.vector_store %arg6[%c0_5, %c0_6], %6 {strides = array<i32>} : memref<2x144xf32, #tpu.memory_space<vmem>>, vector<2x128xf32>,
    %c0_7 = arith.constant 0 : index
    %c0_8 = arith.constant 0 : index
    %8 = vector.load %arg2[%c0_7, %c0_8] : memref<2x128xf32, #tpu.memory_space<vmem>>, vector<2x16xf32>
    %c0_9 = arith.constant 0 : index
    %c128 = arith.constant 128 : index
    %9 = vector.load %arg6[%c0_9, %c128] : memref<2x144xf32, #tpu.memory_space<vmem>>, vector<2x16xf32>
    tpu.vector_store %arg6[%c0_9, %c128], %8 {strides = array<i32>} : memref<2x144xf32, #tpu.memory_space<vmem>>, vector<2x16xf32>,
    %cst = arith.constant 0.000000e+00 : f32
    %10 = vector.broadcast %cst : f32 to vector<40x32xf32>
    %c0_10 = arith.constant 0 : index
    %c0_11 = arith.constant 0 : index
    %11 = vector.load %arg7[%c0_10, %c0_11] : memref<40x32xf32, #tpu.memory_space<vmem>>, vector<40x32xf32>
    tpu.vector_store %arg7[%c0_10, %c0_11], %10 {strides = array<i32>} : memref<40x32xf32, #tpu.memory_space<vmem>>, vector<40x32xf32>,
    %c0_12 = arith.constant 0 : index
    %c0_13 = arith.constant 0 : index
    %12 = vector.load %arg6[%c0_12, %c0_13] : memref<2x144xf32, #tpu.memory_space<vmem>>, vector<2x16xf32>
    %13 = arith.mulf %12, %2 : vector<2x16xf32>
    %c0_14 = arith.constant 0 : index
    %c8 = arith.constant 8 : index
    %14 = vector.load %arg7[%c0_14, %c8] : memref<40x32xf32, #tpu.memory_space<vmem>>, vector<2x16xf32>
    tpu.vector_store %arg7[%c0_14, %c8], %13 {strides = array<i32>} : memref<40x32xf32, #tpu.memory_space<vmem>>, vector<2x16xf32>,
    %c0_15 = arith.constant 0 : index
    %c8_16 = arith.constant 8 : index
    %15 = vector.load %arg6[%c0_15, %c8_16] : memref<2x144xf32, #tpu.memory_space<vmem>>, vector<2x16xf32>
    %16 = arith.mulf %15, %2 : vector<2x16xf32>
    %c2 = arith.constant 2 : index
    %c8_17 = arith.constant 8 : index
    %17 = vector.load %arg7[%c2, %c8_17] : memref<40x32xf32, #tpu.memory_space<vmem>>, vector<2x16xf32>
    tpu.vector_store %arg7[%c2, %c8_17], %16 {strides = array<i32>} : memref<40x32xf32, #tpu.memory_space<vmem>>, vector<2x16xf32>,
    %c0_18 = arith.constant 0 : index
    %c16 = arith.constant 16 : index
    %18 = vector.load %arg6[%c0_18, %c16] : memref<2x144xf32, #tpu.memory_space<vmem>>, vector<2x16xf32>
    %19 = arith.mulf %18, %2 : vector<2x16xf32>
    %c4 = arith.constant 4 : index
    %c8_19 = arith.constant 8 : index
    %20 = vector.load %arg7[%c4, %c8_19] : memref<40x32xf32, #tpu.memory_space<vmem>>, vector<2x16xf32>
    tpu.vector_store %arg7[%c4, %c8_19], %19 {strides = array<i32>} : memref<40x32xf32, #tpu.memory_space<vmem>>, vector<2x16xf32>,
    %c0_20 = arith.constant 0 : index
    %c24 = arith.constant 24 : index
    %21 = vector.load %arg6[%c0_20, %c24] : memref<2x144xf32, #tpu.memory_space<vmem>>, vector<2x16xf32>
    %22 = arith.mulf %21, %2 : vector<2x16xf32>
    %c6 = arith.constant 6 : index
    %c8_21 = arith.constant 8 : index
    %23 = vector.load %arg7[%c6, %c8_21] : memref<40x32xf32, #tpu.memory_space<vmem>>, vector<2x16xf32>
    tpu.vector_store %arg7[%c6, %c8_21], %22 {strides = array<i32>} : memref<40x32xf32, #tpu.memory_space<vmem>>, vector<2x16xf32>,
    %c0_22 = arith.constant 0 : index
    %c32 = arith.constant 32 : index
    %24 = vector.load %arg6[%c0_22, %c32] : memref<2x144xf32, #tpu.memory_space<vmem>>, vector<2x16xf32>
    %25 = arith.mulf %24, %2 : vector<2x16xf32>
    %c8_23 = arith.constant 8 : index
    %c8_24 = arith.constant 8 : index
    %26 = vector.load %arg7[%c8_23, %c8_24] : memref<40x32xf32, #tpu.memory_space<vmem>>, vector<2x16xf32>
    tpu.vector_store %arg7[%c8_23, %c8_24], %25 {strides = array<i32>} : memref<40x32xf32, #tpu.memory_space<vmem>>, vector<2x16xf32>,
    %c0_25 = arith.constant 0 : index
    %c40 = arith.constant 40 : index
    %27 = vector.load %arg6[%c0_25, %c40] : memref<2x144xf32, #tpu.memory_space<vmem>>, vector<2x16xf32>
    %28 = arith.mulf %27, %2 : vector<2x16xf32>
    %c10 = arith.constant 10 : index
    %c8_26 = arith.constant 8 : index
    %29 = vector.load %arg7[%c10, %c8_26] : memref<40x32xf32, #tpu.memory_space<vmem>>, vector<2x16xf32>
    tpu.vector_store %arg7[%c10, %c8_26], %28 {strides = array<i32>} : memref<40x32xf32, #tpu.memory_space<vmem>>, vector<2x16xf32>,
    %c0_27 = arith.constant 0 : index
    %c48 = arith.constant 48 : index
    %30 = vector.load %arg6[%c0_27, %c48] : memref<2x144xf32, #tpu.memory_space<vmem>>, vector<2x16xf32>
    %31 = arith.mulf %30, %2 : vector<2x16xf32>
    %c12 = arith.constant 12 : index
    %c8_28 = arith.constant 8 : index
    %32 = vector.load %arg7[%c12, %c8_28] : memref<40x32xf32, #tpu.memory_space<vmem>>, vector<2x16xf32>
    tpu.vector_store %arg7[%c12, %c8_28], %31 {strides = array<i32>} : memref<40x32xf32, #tpu.memory_space<vmem>>, vector<2x16xf32>,
    %c0_29 = arith.constant 0 : index
    %c56 = arith.constant 56 : index
    %33 = vector.load %arg6[%c0_29, %c56] : memref<2x144xf32, #tpu.memory_space<vmem>>, vector<2x16xf32>
    %34 = arith.mulf %33, %2 : vector<2x16xf32>
    %c14 = arith.constant 14 : index
    %c8_30 = arith.constant 8 : index
    %35 = vector.load %arg7[%c14, %c8_30] : memref<40x32xf32, #tpu.memory_space<vmem>>, vector<2x16xf32>
    tpu.vector_store %arg7[%c14, %c8_30], %34 {strides = array<i32>} : memref<40x32xf32, #tpu.memory_space<vmem>>, vector<2x16xf32>,
    %c0_31 = arith.constant 0 : index
    %c64 = arith.constant 64 : index
    %36 = vector.load %arg6[%c0_31, %c64] : memref<2x144xf32, #tpu.memory_space<vmem>>, vector<2x16xf32>
    %37 = arith.mulf %36, %2 : vector<2x16xf32>
    %c16_32 = arith.constant 16 : index
    %c8_33 = arith.constant 8 : index
    %38 = vector.load %arg7[%c16_32, %c8_33] : memref<40x32xf32, #tpu.memory_space<vmem>>, vector<2x16xf32>
    tpu.vector_store %arg7[%c16_32, %c8_33], %37 {strides = array<i32>} : memref<40x32xf32, #tpu.memory_space<vmem>>, vector<2x16xf32>,
    %c0_34 = arith.constant 0 : index
    %c72 = arith.constant 72 : index
    %39 = vector.load %arg6[%c0_34, %c72] : memref<2x144xf32, #tpu.memory_space<vmem>>, vector<2x16xf32>
    %40 = arith.mulf %39, %2 : vector<2x16xf32>
    %c18 = arith.constant 18 : index
    %c8_35 = arith.constant 8 : index
    %41 = vector.load %arg7[%c18, %c8_35] : memref<40x32xf32, #tpu.memory_space<vmem>>, vector<2x16xf32>
    tpu.vector_store %arg7[%c18, %c8_35], %40 {strides = array<i32>} : memref<40x32xf32, #tpu.memory_space<vmem>>, vector<2x16xf32>,
    %c0_36 = arith.constant 0 : index
    %c80 = arith.constant 80 : index
    %42 = vector.load %arg6[%c0_36, %c80] : memref<2x144xf32, #tpu.memory_space<vmem>>, vector<2x16xf32>
    %43 = arith.mulf %42, %2 : vector<2x16xf32>
    %c20 = arith.constant 20 : index
    %c8_37 = arith.constant 8 : index
    %44 = vector.load %arg7[%c20, %c8_37] : memref<40x32xf32, #tpu.memory_space<vmem>>, vector<2x16xf32>
    tpu.vector_store %arg7[%c20, %c8_37], %43 {strides = array<i32>} : memref<40x32xf32, #tpu.memory_space<vmem>>, vector<2x16xf32>,
    %c0_38 = arith.constant 0 : index
    %c88 = arith.constant 88 : index
    %45 = vector.load %arg6[%c0_38, %c88] : memref<2x144xf32, #tpu.memory_space<vmem>>, vector<2x16xf32>
    %46 = arith.mulf %45, %2 : vector<2x16xf32>
    %c22 = arith.constant 22 : index
    %c8_39 = arith.constant 8 : index
    %47 = vector.load %arg7[%c22, %c8_39] : memref<40x32xf32, #tpu.memory_space<vmem>>, vector<2x16xf32>
    tpu.vector_store %arg7[%c22, %c8_39], %46 {strides = array<i32>} : memref<40x32xf32, #tpu.memory_space<vmem>>, vector<2x16xf32>,
    %c0_40 = arith.constant 0 : index
    %c96 = arith.constant 96 : index
    %48 = vector.load %arg6[%c0_40, %c96] : memref<2x144xf32, #tpu.memory_space<vmem>>, vector<2x16xf32>
    %49 = arith.mulf %48, %2 : vector<2x16xf32>
    %c24_41 = arith.constant 24 : index
    %c8_42 = arith.constant 8 : index
    %50 = vector.load %arg7[%c24_41, %c8_42] : memref<40x32xf32, #tpu.memory_space<vmem>>, vector<2x16xf32>
    tpu.vector_store %arg7[%c24_41, %c8_42], %49 {strides = array<i32>} : memref<40x32xf32, #tpu.memory_space<vmem>>, vector<2x16xf32>,
    %c0_43 = arith.constant 0 : index
    %c104 = arith.constant 104 : index
    %51 = vector.load %arg6[%c0_43, %c104] : memref<2x144xf32, #tpu.memory_space<vmem>>, vector<2x16xf32>
    %52 = arith.mulf %51, %2 : vector<2x16xf32>
    %c26 = arith.constant 26 : index
    %c8_44 = arith.constant 8 : index
    %53 = vector.load %arg7[%c26, %c8_44] : memref<40x32xf32, #tpu.memory_space<vmem>>, vector<2x16xf32>
    tpu.vector_store %arg7[%c26, %c8_44], %52 {strides = array<i32>} : memref<40x32xf32, #tpu.memory_space<vmem>>, vector<2x16xf32>,
    %c0_45 = arith.constant 0 : index
    %c112 = arith.constant 112 : index
    %54 = vector.load %arg6[%c0_45, %c112] : memref<2x144xf32, #tpu.memory_space<vmem>>, vector<2x16xf32>
    %55 = arith.mulf %54, %2 : vector<2x16xf32>
    %c28 = arith.constant 28 : index
    %c8_46 = arith.constant 8 : index
    %56 = vector.load %arg7[%c28, %c8_46] : memref<40x32xf32, #tpu.memory_space<vmem>>, vector<2x16xf32>
    tpu.vector_store %arg7[%c28, %c8_46], %55 {strides = array<i32>} : memref<40x32xf32, #tpu.memory_space<vmem>>, vector<2x16xf32>,
    %c0_47 = arith.constant 0 : index
    %c120 = arith.constant 120 : index
    %57 = vector.load %arg6[%c0_47, %c120] : memref<2x144xf32, #tpu.memory_space<vmem>>, vector<2x16xf32>
    %58 = arith.mulf %57, %2 : vector<2x16xf32>
    %c30 = arith.constant 30 : index
    %c8_48 = arith.constant 8 : index
    %59 = vector.load %arg7[%c30, %c8_48] : memref<40x32xf32, #tpu.memory_space<vmem>>, vector<2x16xf32>
    tpu.vector_store %arg7[%c30, %c8_48], %58 {strides = array<i32>} : memref<40x32xf32, #tpu.memory_space<vmem>>, vector<2x16xf32>,
    %c0_49 = arith.constant 0 : index
    %c128_50 = arith.constant 128 : index
    %60 = vector.load %arg6[%c0_49, %c128_50] : memref<2x144xf32, #tpu.memory_space<vmem>>, vector<2x16xf32>
    %61 = arith.mulf %60, %2 : vector<2x16xf32>
    %c32_51 = arith.constant 32 : index
    %c8_52 = arith.constant 8 : index
    %62 = vector.load %arg7[%c32_51, %c8_52] : memref<40x32xf32, #tpu.memory_space<vmem>>, vector<2x16xf32>
    tpu.vector_store %arg7[%c32_51, %c8_52], %61 {strides = array<i32>} : memref<40x32xf32, #tpu.memory_space<vmem>>, vector<2x16xf32>,
    %cst_53 = arith.constant 0.000000e+00 : f32
    %63 = vector.broadcast %cst_53 : f32 to vector<40x16xf32>
    %c0_54 = arith.constant 0 : index
    %c0_55 = arith.constant 0 : index
    %c0_56 = arith.constant 0 : index
    %64 = vector.load %arg3[%c0_54, %c0_55, %c0_56] : memref<1x40x17xf32, #tpu.memory_space<vmem>>, vector<1x40x1xf32>
    %65 = vector.shape_cast %64 : vector<1x40x1xf32> to vector<40x1xf32>
    %c0_57 = arith.constant 0 : index
    %c0_58 = arith.constant 0 : index
    %66 = vector.load %arg7[%c0_57, %c0_58] : memref<40x32xf32, #tpu.memory_space<vmem>>, vector<40x16xf32>
    %67 = vector.broadcast %65 : vector<40x1xf32> to vector<40x16xf32>
    %68 = arith.mulf %67, %66 : vector<40x16xf32>
    %69 = arith.addf %63, %68 : vector<40x16xf32>
    %c0_59 = arith.constant 0 : index
    %c0_60 = arith.constant 0 : index
    %c1 = arith.constant 1 : index
    %70 = vector.load %arg3[%c0_59, %c0_60, %c1] : memref<1x40x17xf32, #tpu.memory_space<vmem>>, vector<1x40x1xf32>
    %71 = vector.shape_cast %70 : vector<1x40x1xf32> to vector<40x1xf32>
    %c0_61 = arith.constant 0 : index
    %c1_62 = arith.constant 1 : index
    %72 = vector.load %arg7[%c0_61, %c1_62] : memref<40x32xf32, #tpu.memory_space<vmem>>, vector<40x16xf32>
    %73 = vector.broadcast %71 : vector<40x1xf32> to vector<40x16xf32>
    %74 = arith.mulf %73, %72 : vector<40x16xf32>
    %75 = arith.addf %69, %74 : vector<40x16xf32>
    %c0_63 = arith.constant 0 : index
    %c0_64 = arith.constant 0 : index
    %c2_65 = arith.constant 2 : index
    %76 = vector.load %arg3[%c0_63, %c0_64, %c2_65] : memref<1x40x17xf32, #tpu.memory_space<vmem>>, vector<1x40x1xf32>
    %77 = vector.shape_cast %76 : vector<1x40x1xf32> to vector<40x1xf32>
    %c0_66 = arith.constant 0 : index
    %c2_67 = arith.constant 2 : index
    %78 = vector.load %arg7[%c0_66, %c2_67] : memref<40x32xf32, #tpu.memory_space<vmem>>, vector<40x16xf32>
    %79 = vector.broadcast %77 : vector<40x1xf32> to vector<40x16xf32>
    %80 = arith.mulf %79, %78 : vector<40x16xf32>
    %81 = arith.addf %75, %80 : vector<40x16xf32>
    %c0_68 = arith.constant 0 : index
    %c0_69 = arith.constant 0 : index
    %c3 = arith.constant 3 : index
    %82 = vector.load %arg3[%c0_68, %c0_69, %c3] : memref<1x40x17xf32, #tpu.memory_space<vmem>>, vector<1x40x1xf32>
    %83 = vector.shape_cast %82 : vector<1x40x1xf32> to vector<40x1xf32>
    %c0_70 = arith.constant 0 : index
    %c3_71 = arith.constant 3 : index
    %84 = vector.load %arg7[%c0_70, %c3_71] : memref<40x32xf32, #tpu.memory_space<vmem>>, vector<40x16xf32>
    %85 = vector.broadcast %83 : vector<40x1xf32> to vector<40x16xf32>
    %86 = arith.mulf %85, %84 : vector<40x16xf32>
    %87 = arith.addf %81, %86 : vector<40x16xf32>
    %c0_72 = arith.constant 0 : index
    %c0_73 = arith.constant 0 : index
    %c4_74 = arith.constant 4 : index
    %88 = vector.load %arg3[%c0_72, %c0_73, %c4_74] : memref<1x40x17xf32, #tpu.memory_space<vmem>>, vector<1x40x1xf32>
    %89 = vector.shape_cast %88 : vector<1x40x1xf32> to vector<40x1xf32>
    %c0_75 = arith.constant 0 : index
    %c4_76 = arith.constant 4 : index
    %90 = vector.load %arg7[%c0_75, %c4_76] : memref<40x32xf32, #tpu.memory_space<vmem>>, vector<40x16xf32>
    %91 = vector.broadcast %89 : vector<40x1xf32> to vector<40x16xf32>
    %92 = arith.mulf %91, %90 : vector<40x16xf32>
    %93 = arith.addf %87, %92 : vector<40x16xf32>
    %c0_77 = arith.constant 0 : index
    %c0_78 = arith.constant 0 : index
    %c5 = arith.constant 5 : index
    %94 = vector.load %arg3[%c0_77, %c0_78, %c5] : memref<1x40x17xf32, #tpu.memory_space<vmem>>, vector<1x40x1xf32>
    %95 = vector.shape_cast %94 : vector<1x40x1xf32> to vector<40x1xf32>
    %c0_79 = arith.constant 0 : index
    %c5_80 = arith.constant 5 : index
    %96 = vector.load %arg7[%c0_79, %c5_80] : memref<40x32xf32, #tpu.memory_space<vmem>>, vector<40x16xf32>
    %97 = vector.broadcast %95 : vector<40x1xf32> to vector<40x16xf32>
    %98 = arith.mulf %97, %96 : vector<40x16xf32>
    %99 = arith.addf %93, %98 : vector<40x16xf32>
    %c0_81 = arith.constant 0 : index
    %c0_82 = arith.constant 0 : index
    %c6_83 = arith.constant 6 : index
    %100 = vector.load %arg3[%c0_81, %c0_82, %c6_83] : memref<1x40x17xf32, #tpu.memory_space<vmem>>, vector<1x40x1xf32>
    %101 = vector.shape_cast %100 : vector<1x40x1xf32> to vector<40x1xf32>
    %c0_84 = arith.constant 0 : index
    %c6_85 = arith.constant 6 : index
    %102 = vector.load %arg7[%c0_84, %c6_85] : memref<40x32xf32, #tpu.memory_space<vmem>>, vector<40x16xf32>
    %103 = vector.broadcast %101 : vector<40x1xf32> to vector<40x16xf32>
    %104 = arith.mulf %103, %102 : vector<40x16xf32>
    %105 = arith.addf %99, %104 : vector<40x16xf32>
    %c0_86 = arith.constant 0 : index
    %c0_87 = arith.constant 0 : index
    %c7 = arith.constant 7 : index
    %106 = vector.load %arg3[%c0_86, %c0_87, %c7] : memref<1x40x17xf32, #tpu.memory_space<vmem>>, vector<1x40x1xf32>
    %107 = vector.shape_cast %106 : vector<1x40x1xf32> to vector<40x1xf32>
    %c0_88 = arith.constant 0 : index
    %c7_89 = arith.constant 7 : index
    %108 = vector.load %arg7[%c0_88, %c7_89] : memref<40x32xf32, #tpu.memory_space<vmem>>, vector<40x16xf32>
    %109 = vector.broadcast %107 : vector<40x1xf32> to vector<40x16xf32>
    %110 = arith.mulf %109, %108 : vector<40x16xf32>
    %111 = arith.addf %105, %110 : vector<40x16xf32>
    %c0_90 = arith.constant 0 : index
    %c0_91 = arith.constant 0 : index
    %c8_92 = arith.constant 8 : index
    %112 = vector.load %arg3[%c0_90, %c0_91, %c8_92] : memref<1x40x17xf32, #tpu.memory_space<vmem>>, vector<1x40x1xf32>
    %113 = vector.shape_cast %112 : vector<1x40x1xf32> to vector<40x1xf32>
    %c0_93 = arith.constant 0 : index
    %c8_94 = arith.constant 8 : index
    %114 = vector.load %arg7[%c0_93, %c8_94] : memref<40x32xf32, #tpu.memory_space<vmem>>, vector<40x16xf32>
    %115 = vector.broadcast %113 : vector<40x1xf32> to vector<40x16xf32>
    %116 = arith.mulf %115, %114 : vector<40x16xf32>
    %117 = arith.addf %111, %116 : vector<40x16xf32>
    %c0_95 = arith.constant 0 : index
    %c0_96 = arith.constant 0 : index
    %c9 = arith.constant 9 : index
    %118 = vector.load %arg3[%c0_95, %c0_96, %c9] : memref<1x40x17xf32, #tpu.memory_space<vmem>>, vector<1x40x1xf32>
    %119 = vector.shape_cast %118 : vector<1x40x1xf32> to vector<40x1xf32>
    %c0_97 = arith.constant 0 : index
    %c9_98 = arith.constant 9 : index
    %120 = vector.load %arg7[%c0_97, %c9_98] : memref<40x32xf32, #tpu.memory_space<vmem>>, vector<40x16xf32>
    %121 = vector.broadcast %119 : vector<40x1xf32> to vector<40x16xf32>
    %122 = arith.mulf %121, %120 : vector<40x16xf32>
    %123 = arith.addf %117, %122 : vector<40x16xf32>
    %c0_99 = arith.constant 0 : index
    %c0_100 = arith.constant 0 : index
    %c10_101 = arith.constant 10 : index
    %124 = vector.load %arg3[%c0_99, %c0_100, %c10_101] : memref<1x40x17xf32, #tpu.memory_space<vmem>>, vector<1x40x1xf32>
    %125 = vector.shape_cast %124 : vector<1x40x1xf32> to vector<40x1xf32>
    %c0_102 = arith.constant 0 : index
    %c10_103 = arith.constant 10 : index
    %126 = vector.load %arg7[%c0_102, %c10_103] : memref<40x32xf32, #tpu.memory_space<vmem>>, vector<40x16xf32>
    %127 = vector.broadcast %125 : vector<40x1xf32> to vector<40x16xf32>
    %128 = arith.mulf %127, %126 : vector<40x16xf32>
    %129 = arith.addf %123, %128 : vector<40x16xf32>
    %c0_104 = arith.constant 0 : index
    %c0_105 = arith.constant 0 : index
    %c11 = arith.constant 11 : index
    %130 = vector.load %arg3[%c0_104, %c0_105, %c11] : memref<1x40x17xf32, #tpu.memory_space<vmem>>, vector<1x40x1xf32>
    %131 = vector.shape_cast %130 : vector<1x40x1xf32> to vector<40x1xf32>
    %c0_106 = arith.constant 0 : index
    %c11_107 = arith.constant 11 : index
    %132 = vector.load %arg7[%c0_106, %c11_107] : memref<40x32xf32, #tpu.memory_space<vmem>>, vector<40x16xf32>
    %133 = vector.broadcast %131 : vector<40x1xf32> to vector<40x16xf32>
    %134 = arith.mulf %133, %132 : vector<40x16xf32>
    %135 = arith.addf %129, %134 : vector<40x16xf32>
    %c0_108 = arith.constant 0 : index
    %c0_109 = arith.constant 0 : index
    %c12_110 = arith.constant 12 : index
    %136 = vector.load %arg3[%c0_108, %c0_109, %c12_110] : memref<1x40x17xf32, #tpu.memory_space<vmem>>, vector<1x40x1xf32>
    %137 = vector.shape_cast %136 : vector<1x40x1xf32> to vector<40x1xf32>
    %c0_111 = arith.constant 0 : index
    %c12_112 = arith.constant 12 : index
    %138 = vector.load %arg7[%c0_111, %c12_112] : memref<40x32xf32, #tpu.memory_space<vmem>>, vector<40x16xf32>
    %139 = vector.broadcast %137 : vector<40x1xf32> to vector<40x16xf32>
    %140 = arith.mulf %139, %138 : vector<40x16xf32>
    %141 = arith.addf %135, %140 : vector<40x16xf32>
    %c0_113 = arith.constant 0 : index
    %c0_114 = arith.constant 0 : index
    %c13 = arith.constant 13 : index
    %142 = vector.load %arg3[%c0_113, %c0_114, %c13] : memref<1x40x17xf32, #tpu.memory_space<vmem>>, vector<1x40x1xf32>
    %143 = vector.shape_cast %142 : vector<1x40x1xf32> to vector<40x1xf32>
    %c0_115 = arith.constant 0 : index
    %c13_116 = arith.constant 13 : index
    %144 = vector.load %arg7[%c0_115, %c13_116] : memref<40x32xf32, #tpu.memory_space<vmem>>, vector<40x16xf32>
    %145 = vector.broadcast %143 : vector<40x1xf32> to vector<40x16xf32>
    %146 = arith.mulf %145, %144 : vector<40x16xf32>
    %147 = arith.addf %141, %146 : vector<40x16xf32>
    %c0_117 = arith.constant 0 : index
    %c0_118 = arith.constant 0 : index
    %c14_119 = arith.constant 14 : index
    %148 = vector.load %arg3[%c0_117, %c0_118, %c14_119] : memref<1x40x17xf32, #tpu.memory_space<vmem>>, vector<1x40x1xf32>
    %149 = vector.shape_cast %148 : vector<1x40x1xf32> to vector<40x1xf32>
    %c0_120 = arith.constant 0 : index
    %c14_121 = arith.constant 14 : index
    %150 = vector.load %arg7[%c0_120, %c14_121] : memref<40x32xf32, #tpu.memory_space<vmem>>, vector<40x16xf32>
    %151 = vector.broadcast %149 : vector<40x1xf32> to vector<40x16xf32>
    %152 = arith.mulf %151, %150 : vector<40x16xf32>
    %153 = arith.addf %147, %152 : vector<40x16xf32>
    %c0_122 = arith.constant 0 : index
    %c0_123 = arith.constant 0 : index
    %c15 = arith.constant 15 : index
    %154 = vector.load %arg3[%c0_122, %c0_123, %c15] : memref<1x40x17xf32, #tpu.memory_space<vmem>>, vector<1x40x1xf32>
    %155 = vector.shape_cast %154 : vector<1x40x1xf32> to vector<40x1xf32>
    %c0_124 = arith.constant 0 : index
    %c15_125 = arith.constant 15 : index
    %156 = vector.load %arg7[%c0_124, %c15_125] : memref<40x32xf32, #tpu.memory_space<vmem>>, vector<40x16xf32>
    %157 = vector.broadcast %155 : vector<40x1xf32> to vector<40x16xf32>
    %158 = arith.mulf %157, %156 : vector<40x16xf32>
    %159 = arith.addf %153, %158 : vector<40x16xf32>
    %c0_126 = arith.constant 0 : index
    %c0_127 = arith.constant 0 : index
    %c16_128 = arith.constant 16 : index
    %160 = vector.load %arg3[%c0_126, %c0_127, %c16_128] : memref<1x40x17xf32, #tpu.memory_space<vmem>>, vector<1x40x1xf32>
    %161 = vector.shape_cast %160 : vector<1x40x1xf32> to vector<40x1xf32>
    %c0_129 = arith.constant 0 : index
    %c16_130 = arith.constant 16 : index
    %162 = vector.load %arg7[%c0_129, %c16_130] : memref<40x32xf32, #tpu.memory_space<vmem>>, vector<40x16xf32>
    %163 = vector.broadcast %161 : vector<40x1xf32> to vector<40x16xf32>
    %164 = arith.mulf %163, %162 : vector<40x16xf32>
    %165 = arith.addf %159, %164 : vector<40x16xf32>
    %166 = arith.mulf %165, %5 : vector<40x16xf32>
    %c0_131 = arith.constant 0 : index
    %c0_132 = arith.constant 0 : index
    %167 = vector.load %arg8[%c0_131, %c0_132] : memref<40x16xf32, #tpu.memory_space<vmem>>, vector<40x16xf32>
    tpu.vector_store %arg8[%c0_131, %c0_132], %166 {strides = array<i32>} : memref<40x16xf32, #tpu.memory_space<vmem>>, vector<40x16xf32>,
    %c0_133 = arith.constant 0 : index
    %c8_134 = arith.constant 8 : index
    %168 = vector.load %arg8[%c0_133, %c8_134] : memref<40x16xf32, #tpu.memory_space<vmem>>, vector<2x8xf32>
    %c2_135 = arith.constant 2 : index
    %c0_136 = arith.constant 0 : index
    %169 = vector.load %arg8[%c2_135, %c0_136] : memref<40x16xf32, #tpu.memory_space<vmem>>, vector<2x8xf32>
    %170 = arith.addf %168, %169 : vector<2x8xf32>
    %c0_137 = arith.constant 0 : index
    %c0_138 = arith.constant 0 : index
    %c0_139 = arith.constant 0 : index
    %171 = vector.load %arg5[%c0_137, %c0_138, %c0_139] : memref<1x2x128xf32, #tpu.memory_space<vmem>>, vector<1x2x8xf32>
    %172 = vector.shape_cast %171 : vector<1x2x8xf32> to vector<2x8xf32>
    %173 = vector.shape_cast %170 : vector<2x8xf32> to vector<1x2x8xf32>
    tpu.vector_store %arg5[%c0_137, %c0_138, %c0_139], %173 {strides = array<i32>} : memref<1x2x128xf32, #tpu.memory_space<vmem>>, vector<1x2x8xf32>,
    %c2_140 = arith.constant 2 : index
    %c8_141 = arith.constant 8 : index
    %174 = vector.load %arg8[%c2_140, %c8_141] : memref<40x16xf32, #tpu.memory_space<vmem>>, vector<2x8xf32>
    %c4_142 = arith.constant 4 : index
    %c0_143 = arith.constant 0 : index
    %175 = vector.load %arg8[%c4_142, %c0_143] : memref<40x16xf32, #tpu.memory_space<vmem>>, vector<2x8xf32>
    %176 = arith.addf %174, %175 : vector<2x8xf32>
    %c0_144 = arith.constant 0 : index
    %c0_145 = arith.constant 0 : index
    %c8_146 = arith.constant 8 : index
    %177 = vector.load %arg5[%c0_144, %c0_145, %c8_146] : memref<1x2x128xf32, #tpu.memory_space<vmem>>, vector<1x2x8xf32>
    %178 = vector.shape_cast %177 : vector<1x2x8xf32> to vector<2x8xf32>
    %179 = vector.shape_cast %176 : vector<2x8xf32> to vector<1x2x8xf32>
    tpu.vector_store %arg5[%c0_144, %c0_145, %c8_146], %179 {strides = array<i32>} : memref<1x2x128xf32, #tpu.memory_space<vmem>>, vector<1x2x8xf32>,
    %c4_147 = arith.constant 4 : index
    %c8_148 = arith.constant 8 : index
    %180 = vector.load %arg8[%c4_147, %c8_148] : memref<40x16xf32, #tpu.memory_space<vmem>>, vector<2x8xf32>
    %c6_149 = arith.constant 6 : index
    %c0_150 = arith.constant 0 : index
    %181 = vector.load %arg8[%c6_149, %c0_150] : memref<40x16xf32, #tpu.memory_space<vmem>>, vector<2x8xf32>
    %182 = arith.addf %180, %181 : vector<2x8xf32>
    %c0_151 = arith.constant 0 : index
    %c0_152 = arith.constant 0 : index
    %c16_153 = arith.constant 16 : index
    %183 = vector.load %arg5[%c0_151, %c0_152, %c16_153] : memref<1x2x128xf32, #tpu.memory_space<vmem>>, vector<1x2x8xf32>
    %184 = vector.shape_cast %183 : vector<1x2x8xf32> to vector<2x8xf32>
    %185 = vector.shape_cast %182 : vector<2x8xf32> to vector<1x2x8xf32>
    tpu.vector_store %arg5[%c0_151, %c0_152, %c16_153], %185 {strides = array<i32>} : memref<1x2x128xf32, #tpu.memory_space<vmem>>, vector<1x2x8xf32>,
    %c6_154 = arith.constant 6 : index
    %c8_155 = arith.constant 8 : index
    %186 = vector.load %arg8[%c6_154, %c8_155] : memref<40x16xf32, #tpu.memory_space<vmem>>, vector<2x8xf32>
    %c8_156 = arith.constant 8 : index
    %c0_157 = arith.constant 0 : index
    %187 = vector.load %arg8[%c8_156, %c0_157] : memref<40x16xf32, #tpu.memory_space<vmem>>, vector<2x8xf32>
    %188 = arith.addf %186, %187 : vector<2x8xf32>
    %c0_158 = arith.constant 0 : index
    %c0_159 = arith.constant 0 : index
    %c24_160 = arith.constant 24 : index
    %189 = vector.load %arg5[%c0_158, %c0_159, %c24_160] : memref<1x2x128xf32, #tpu.memory_space<vmem>>, vector<1x2x8xf32>
    %190 = vector.shape_cast %189 : vector<1x2x8xf32> to vector<2x8xf32>
    %191 = vector.shape_cast %188 : vector<2x8xf32> to vector<1x2x8xf32>
    tpu.vector_store %arg5[%c0_158, %c0_159, %c24_160], %191 {strides = array<i32>} : memref<1x2x128xf32, #tpu.memory_space<vmem>>, vector<1x2x8xf32>,
    %c8_161 = arith.constant 8 : index
    %c8_162 = arith.constant 8 : index
    %192 = vector.load %arg8[%c8_161, %c8_162] : memref<40x16xf32, #tpu.memory_space<vmem>>, vector<2x8xf32>
    %c10_163 = arith.constant 10 : index
    %c0_164 = arith.constant 0 : index
    %193 = vector.load %arg8[%c10_163, %c0_164] : memref<40x16xf32, #tpu.memory_space<vmem>>, vector<2x8xf32>
    %194 = arith.addf %192, %193 : vector<2x8xf32>
    %c0_165 = arith.constant 0 : index
    %c0_166 = arith.constant 0 : index
    %c32_167 = arith.constant 32 : index
    %195 = vector.load %arg5[%c0_165, %c0_166, %c32_167] : memref<1x2x128xf32, #tpu.memory_space<vmem>>, vector<1x2x8xf32>
    %196 = vector.shape_cast %195 : vector<1x2x8xf32> to vector<2x8xf32>
    %197 = vector.shape_cast %194 : vector<2x8xf32> to vector<1x2x8xf32>
    tpu.vector_store %arg5[%c0_165, %c0_166, %c32_167], %197 {strides = array<i32>} : memref<1x2x128xf32, #tpu.memory_space<vmem>>, vector<1x2x8xf32>,
    %c10_168 = arith.constant 10 : index
    %c8_169 = arith.constant 8 : index
    %198 = vector.load %arg8[%c10_168, %c8_169] : memref<40x16xf32, #tpu.memory_space<vmem>>, vector<2x8xf32>
    %c12_170 = arith.constant 12 : index
    %c0_171 = arith.constant 0 : index
    %199 = vector.load %arg8[%c12_170, %c0_171] : memref<40x16xf32, #tpu.memory_space<vmem>>, vector<2x8xf32>
    %200 = arith.addf %198, %199 : vector<2x8xf32>
    %c0_172 = arith.constant 0 : index
    %c0_173 = arith.constant 0 : index
    %c40_174 = arith.constant 40 : index
    %201 = vector.load %arg5[%c0_172, %c0_173, %c40_174] : memref<1x2x128xf32, #tpu.memory_space<vmem>>, vector<1x2x8xf32>
    %202 = vector.shape_cast %201 : vector<1x2x8xf32> to vector<2x8xf32>
    %203 = vector.shape_cast %200 : vector<2x8xf32> to vector<1x2x8xf32>
    tpu.vector_store %arg5[%c0_172, %c0_173, %c40_174], %203 {strides = array<i32>} : memref<1x2x128xf32, #tpu.memory_space<vmem>>, vector<1x2x8xf32>,
    %c12_175 = arith.constant 12 : index
    %c8_176 = arith.constant 8 : index
    %204 = vector.load %arg8[%c12_175, %c8_176] : memref<40x16xf32, #tpu.memory_space<vmem>>, vector<2x8xf32>
    %c14_177 = arith.constant 14 : index
    %c0_178 = arith.constant 0 : index
    %205 = vector.load %arg8[%c14_177, %c0_178] : memref<40x16xf32, #tpu.memory_space<vmem>>, vector<2x8xf32>
    %206 = arith.addf %204, %205 : vector<2x8xf32>
    %c0_179 = arith.constant 0 : index
    %c0_180 = arith.constant 0 : index
    %c48_181 = arith.constant 48 : index
    %207 = vector.load %arg5[%c0_179, %c0_180, %c48_181] : memref<1x2x128xf32, #tpu.memory_space<vmem>>, vector<1x2x8xf32>
    %208 = vector.shape_cast %207 : vector<1x2x8xf32> to vector<2x8xf32>
    %209 = vector.shape_cast %206 : vector<2x8xf32> to vector<1x2x8xf32>
    tpu.vector_store %arg5[%c0_179, %c0_180, %c48_181], %209 {strides = array<i32>} : memref<1x2x128xf32, #tpu.memory_space<vmem>>, vector<1x2x8xf32>,
    %c14_182 = arith.constant 14 : index
    %c8_183 = arith.constant 8 : index
    %210 = vector.load %arg8[%c14_182, %c8_183] : memref<40x16xf32, #tpu.memory_space<vmem>>, vector<2x8xf32>
    %c16_184 = arith.constant 16 : index
    %c0_185 = arith.constant 0 : index
    %211 = vector.load %arg8[%c16_184, %c0_185] : memref<40x16xf32, #tpu.memory_space<vmem>>, vector<2x8xf32>
    %212 = arith.addf %210, %211 : vector<2x8xf32>
    %c0_186 = arith.constant 0 : index
    %c0_187 = arith.constant 0 : index
    %c56_188 = arith.constant 56 : index
    %213 = vector.load %arg5[%c0_186, %c0_187, %c56_188] : memref<1x2x128xf32, #tpu.memory_space<vmem>>, vector<1x2x8xf32>
    %214 = vector.shape_cast %213 : vector<1x2x8xf32> to vector<2x8xf32>
    %215 = vector.shape_cast %212 : vector<2x8xf32> to vector<1x2x8xf32>
    tpu.vector_store %arg5[%c0_186, %c0_187, %c56_188], %215 {strides = array<i32>} : memref<1x2x128xf32, #tpu.memory_space<vmem>>, vector<1x2x8xf32>,
    %c16_189 = arith.constant 16 : index
    %c8_190 = arith.constant 8 : index
    %216 = vector.load %arg8[%c16_189, %c8_190] : memref<40x16xf32, #tpu.memory_space<vmem>>, vector<2x8xf32>
    %c18_191 = arith.constant 18 : index
    %c0_192 = arith.constant 0 : index
    %217 = vector.load %arg8[%c18_191, %c0_192] : memref<40x16xf32, #tpu.memory_space<vmem>>, vector<2x8xf32>
    %218 = arith.addf %216, %217 : vector<2x8xf32>
    %c0_193 = arith.constant 0 : index
    %c0_194 = arith.constant 0 : index
    %c64_195 = arith.constant 64 : index
    %219 = vector.load %arg5[%c0_193, %c0_194, %c64_195] : memref<1x2x128xf32, #tpu.memory_space<vmem>>, vector<1x2x8xf32>
    %220 = vector.shape_cast %219 : vector<1x2x8xf32> to vector<2x8xf32>
    %221 = vector.shape_cast %218 : vector<2x8xf32> to vector<1x2x8xf32>
    tpu.vector_store %arg5[%c0_193, %c0_194, %c64_195], %221 {strides = array<i32>} : memref<1x2x128xf32, #tpu.memory_space<vmem>>, vector<1x2x8xf32>,
    %c18_196 = arith.constant 18 : index
    %c8_197 = arith.constant 8 : index
    %222 = vector.load %arg8[%c18_196, %c8_197] : memref<40x16xf32, #tpu.memory_space<vmem>>, vector<2x8xf32>
    %c20_198 = arith.constant 20 : index
    %c0_199 = arith.constant 0 : index
    %223 = vector.load %arg8[%c20_198, %c0_199] : memref<40x16xf32, #tpu.memory_space<vmem>>, vector<2x8xf32>
    %224 = arith.addf %222, %223 : vector<2x8xf32>
    %c0_200 = arith.constant 0 : index
    %c0_201 = arith.constant 0 : index
    %c72_202 = arith.constant 72 : index
    %225 = vector.load %arg5[%c0_200, %c0_201, %c72_202] : memref<1x2x128xf32, #tpu.memory_space<vmem>>, vector<1x2x8xf32>
    %226 = vector.shape_cast %225 : vector<1x2x8xf32> to vector<2x8xf32>
    %227 = vector.shape_cast %224 : vector<2x8xf32> to vector<1x2x8xf32>
    tpu.vector_store %arg5[%c0_200, %c0_201, %c72_202], %227 {strides = array<i32>} : memref<1x2x128xf32, #tpu.memory_space<vmem>>, vector<1x2x8xf32>,
    %c20_203 = arith.constant 20 : index
    %c8_204 = arith.constant 8 : index
    %228 = vector.load %arg8[%c20_203, %c8_204] : memref<40x16xf32, #tpu.memory_space<vmem>>, vector<2x8xf32>
    %c22_205 = arith.constant 22 : index
    %c0_206 = arith.constant 0 : index
    %229 = vector.load %arg8[%c22_205, %c0_206] : memref<40x16xf32, #tpu.memory_space<vmem>>, vector<2x8xf32>
    %230 = arith.addf %228, %229 : vector<2x8xf32>
    %c0_207 = arith.constant 0 : index
    %c0_208 = arith.constant 0 : index
    %c80_209 = arith.constant 80 : index
    %231 = vector.load %arg5[%c0_207, %c0_208, %c80_209] : memref<1x2x128xf32, #tpu.memory_space<vmem>>, vector<1x2x8xf32>
    %232 = vector.shape_cast %231 : vector<1x2x8xf32> to vector<2x8xf32>
    %233 = vector.shape_cast %230 : vector<2x8xf32> to vector<1x2x8xf32>
    tpu.vector_store %arg5[%c0_207, %c0_208, %c80_209], %233 {strides = array<i32>} : memref<1x2x128xf32, #tpu.memory_space<vmem>>, vector<1x2x8xf32>,
    %c22_210 = arith.constant 22 : index
    %c8_211 = arith.constant 8 : index
    %234 = vector.load %arg8[%c22_210, %c8_211] : memref<40x16xf32, #tpu.memory_space<vmem>>, vector<2x8xf32>
    %c24_212 = arith.constant 24 : index
    %c0_213 = arith.constant 0 : index
    %235 = vector.load %arg8[%c24_212, %c0_213] : memref<40x16xf32, #tpu.memory_space<vmem>>, vector<2x8xf32>
    %236 = arith.addf %234, %235 : vector<2x8xf32>
    %c0_214 = arith.constant 0 : index
    %c0_215 = arith.constant 0 : index
    %c88_216 = arith.constant 88 : index
    %237 = vector.load %arg5[%c0_214, %c0_215, %c88_216] : memref<1x2x128xf32, #tpu.memory_space<vmem>>, vector<1x2x8xf32>
    %238 = vector.shape_cast %237 : vector<1x2x8xf32> to vector<2x8xf32>
    %239 = vector.shape_cast %236 : vector<2x8xf32> to vector<1x2x8xf32>
    tpu.vector_store %arg5[%c0_214, %c0_215, %c88_216], %239 {strides = array<i32>} : memref<1x2x128xf32, #tpu.memory_space<vmem>>, vector<1x2x8xf32>,
    %c24_217 = arith.constant 24 : index
    %c8_218 = arith.constant 8 : index
    %240 = vector.load %arg8[%c24_217, %c8_218] : memref<40x16xf32, #tpu.memory_space<vmem>>, vector<2x8xf32>
    %c26_219 = arith.constant 26 : index
    %c0_220 = arith.constant 0 : index
    %241 = vector.load %arg8[%c26_219, %c0_220] : memref<40x16xf32, #tpu.memory_space<vmem>>, vector<2x8xf32>
    %242 = arith.addf %240, %241 : vector<2x8xf32>
    %c0_221 = arith.constant 0 : index
    %c0_222 = arith.constant 0 : index
    %c96_223 = arith.constant 96 : index
    %243 = vector.load %arg5[%c0_221, %c0_222, %c96_223] : memref<1x2x128xf32, #tpu.memory_space<vmem>>, vector<1x2x8xf32>
    %244 = vector.shape_cast %243 : vector<1x2x8xf32> to vector<2x8xf32>
    %245 = vector.shape_cast %242 : vector<2x8xf32> to vector<1x2x8xf32>
    tpu.vector_store %arg5[%c0_221, %c0_222, %c96_223], %245 {strides = array<i32>} : memref<1x2x128xf32, #tpu.memory_space<vmem>>, vector<1x2x8xf32>,
    %c26_224 = arith.constant 26 : index
    %c8_225 = arith.constant 8 : index
    %246 = vector.load %arg8[%c26_224, %c8_225] : memref<40x16xf32, #tpu.memory_space<vmem>>, vector<2x8xf32>
    %c28_226 = arith.constant 28 : index
    %c0_227 = arith.constant 0 : index
    %247 = vector.load %arg8[%c28_226, %c0_227] : memref<40x16xf32, #tpu.memory_space<vmem>>, vector<2x8xf32>
    %248 = arith.addf %246, %247 : vector<2x8xf32>
    %c0_228 = arith.constant 0 : index
    %c0_229 = arith.constant 0 : index
    %c104_230 = arith.constant 104 : index
    %249 = vector.load %arg5[%c0_228, %c0_229, %c104_230] : memref<1x2x128xf32, #tpu.memory_space<vmem>>, vector<1x2x8xf32>
    %250 = vector.shape_cast %249 : vector<1x2x8xf32> to vector<2x8xf32>
    %251 = vector.shape_cast %248 : vector<2x8xf32> to vector<1x2x8xf32>
    tpu.vector_store %arg5[%c0_228, %c0_229, %c104_230], %251 {strides = array<i32>} : memref<1x2x128xf32, #tpu.memory_space<vmem>>, vector<1x2x8xf32>,
    %c28_231 = arith.constant 28 : index
    %c8_232 = arith.constant 8 : index
    %252 = vector.load %arg8[%c28_231, %c8_232] : memref<40x16xf32, #tpu.memory_space<vmem>>, vector<2x8xf32>
    %c30_233 = arith.constant 30 : index
    %c0_234 = arith.constant 0 : index
    %253 = vector.load %arg8[%c30_233, %c0_234] : memref<40x16xf32, #tpu.memory_space<vmem>>, vector<2x8xf32>
    %254 = arith.addf %252, %253 : vector<2x8xf32>
    %c0_235 = arith.constant 0 : index
    %c0_236 = arith.constant 0 : index
    %c112_237 = arith.constant 112 : index
    %255 = vector.load %arg5[%c0_235, %c0_236, %c112_237] : memref<1x2x128xf32, #tpu.memory_space<vmem>>, vector<1x2x8xf32>
    %256 = vector.shape_cast %255 : vector<1x2x8xf32> to vector<2x8xf32>
    %257 = vector.shape_cast %254 : vector<2x8xf32> to vector<1x2x8xf32>
    tpu.vector_store %arg5[%c0_235, %c0_236, %c112_237], %257 {strides = array<i32>} : memref<1x2x128xf32, #tpu.memory_space<vmem>>, vector<1x2x8xf32>,
    %c30_238 = arith.constant 30 : index
    %c8_239 = arith.constant 8 : index
    %258 = vector.load %arg8[%c30_238, %c8_239] : memref<40x16xf32, #tpu.memory_space<vmem>>, vector<2x8xf32>
    %c32_240 = arith.constant 32 : index
    %c0_241 = arith.constant 0 : index
    %259 = vector.load %arg8[%c32_240, %c0_241] : memref<40x16xf32, #tpu.memory_space<vmem>>, vector<2x8xf32>
    %260 = arith.addf %258, %259 : vector<2x8xf32>
    %c0_242 = arith.constant 0 : index
    %c0_243 = arith.constant 0 : index
    %c120_244 = arith.constant 120 : index
    %261 = vector.load %arg5[%c0_242, %c0_243, %c120_244] : memref<1x2x128xf32, #tpu.memory_space<vmem>>, vector<1x2x8xf32>
    %262 = vector.shape_cast %261 : vector<1x2x8xf32> to vector<2x8xf32>
    %263 = vector.shape_cast %260 : vector<2x8xf32> to vector<1x2x8xf32>
    tpu.vector_store %arg5[%c0_242, %c0_243, %c120_244], %263 {strides = array<i32>} : memref<1x2x128xf32, #tpu.memory_space<vmem>>, vector<1x2x8xf32>,
    return
  }
  func.func @transform_0(%arg0: i32) -> (i32, i32) {
    %c0_i32 = arith.constant 0 : i32
    %c0_i32_0 = arith.constant 0 : i32
    return %c0_i32, %arg0 : i32, i32
  }
  func.func @transform_1(%arg0: i32) -> (i32, i32) {
    %c1_i32 = arith.constant 1 : i32
    %0 = arith.addi %arg0, %c1_i32 : i32
    %c1_i32_0 = arith.constant 1 : i32
    %1 = arith.muli %0, %c1_i32_0 : i32
    %c0_i32 = arith.constant 0 : i32
    %c0_i32_1 = arith.constant 0 : i32
    return %c0_i32, %1 : i32, i32
  }
  func.func @transform_2(%arg0: i32) -> (i32, i32, i32) {
    %c0_i32 = arith.constant 0 : i32
    %c0_i32_0 = arith.constant 0 : i32
    %c0_i32_1 = arith.constant 0 : i32
    return %arg0, %c0_i32, %c0_i32_0 : i32, i32, i32
  }
  func.func @transform_3(%arg0: i32) -> (i32, i32) {
    %c0_i32 = arith.constant 0 : i32
    %c0_i32_0 = arith.constant 0 : i32
    %c0_i32_1 = arith.constant 0 : i32
    return %c0_i32, %c0_i32_0 : i32, i32
  }
  func.func @transform_4(%arg0: i32) -> (i32, i32, i32) {
    %c0_i32 = arith.constant 0 : i32
    %c0_i32_0 = arith.constant 0 : i32
    %c0_i32_1 = arith.constant 0 : i32
    return %arg0, %c0_i32, %c0_i32_0 : i32, i32, i32
  }
}

</mosaic_0001>

<llo_original>
// kernel: filter_module_forward.1
$region0: #{filter_module_forward.1}
  #allocation0 [shape = 'u32[]', space=smem, size = 0x4, offset = 0x4, fixed_abs, tag = 'smem constant byte address 0x4 - core index']
  #allocation1 [shape = 'u32[144,128]{1,0:T(1,128)}', space=vmem, size = 0x12000, scoped, tag = 'internal scratch']
  #allocation2 [shape = 'f32[2,144]{1,0:T(2,128)}', space=vmem, size = 0x800, scoped, tag = 'scratch operand']
  #allocation3 [shape = 'f32[40,32]{1,0:T(8,128)}', space=vmem, size = 0x5000, scoped, tag = 'scratch operand']
  #allocation4 [shape = 'f32[40,16]{1,0:T(8,128)}', space=vmem, size = 0x5000, scoped, tag = 'scratch operand']
  %s0 = inlined_call_operand.vmem [shape: f32[2,256], index: 0, kind: input, shape index: {}, may-alias: {0,1}]
  %s1 = inlined_call_operand.vmem [shape: f32[2,256], index: 1, kind: input, shape index: {}, may-alias: {0,1}]
  %s2 = inlined_call_operand.vmem [shape: f32[1,40,17], index: 2, kind: input, shape index: {}]
  %s3 = inlined_call_operand.vmem [shape: f32[1,16], index: 3, kind: input, shape index: {}]
  %s4 = inlined_call_operand.hbm [shape: f32[1,2,128], index: 4, kind: output, shape index: {}]
  %s5 = sld [smem:[#allocation0]]
  $region26: #{filter_module_forward.1} parent=0
    _
  %s7 = ssub.s32 1, %s5
  %s8 = scalar_select 0, %s7, %s5
  $region1: #{filter_module_forward.1} parent=0
    #allocation5 [shape = 'u8[1024]{0}', space=vmem, size = 0x400, scoped, tag = 'output window, operand 0, single buffered']
    #allocation6 [shape = 's32[1]{0}', space=sflag, size = 0x4, scoped, tag = 'scoped memory for filter_module_forward.1']
    %9 = vsyncpa [#allocation6], 0
    // Predicated region
    $region2: #{filter_module_forward.1} parent=1 // pred_check
      _
    $region3: #{filter_module_forward.1} parent=1 // pred_check_branch
      %11 = sbr.rel (0) target = $region5
    $region4: #{filter_module_forward.1} parent=1 // pred_region
      _
    $region5: #{filter_module_forward.1} parent=1 // pred_fallthru
      _
    // Predicated region
    $region6: #{filter_module_forward.1} parent=1 // pred_check
      _
    $region7: #{filter_module_forward.1} parent=1 // pred_check_branch
      %13 = sbr.rel (0) target = $region9
    $region8: #{filter_module_forward.1} parent=1 // pred_region
      %s14 = sadd.s32 0, 1
      %p15 = scmp.lt.s32.totalorder %s14, 1
      %s16 = scalar_select %p15, %s14, 1
      %s17 = smul.addr %s16, 2
      %s18 = scalar_lea.vmem %s1, %s17
      %s19 = sadd.s32 0, 1
    $region9: #{filter_module_forward.1} parent=1 // pred_fallthru
      _
    // Predicated region
    $region10: #{filter_module_forward.1} parent=1 // pred_check
      _
    $region11: #{filter_module_forward.1} parent=1 // pred_check_branch
      %21 = sbr.rel (0) target = $region13
    $region12: #{filter_module_forward.1} parent=1 // pred_region
      _
    $region13: #{filter_module_forward.1} parent=1 // pred_fallthru
      _
    // Predicated region
    $region14: #{filter_module_forward.1} parent=1 // pred_check
      _
    $region15: #{filter_module_forward.1} parent=1 // pred_check_branch
      %23 = sbr.rel (0) target = $region17
    $region16: #{filter_module_forward.1} parent=1 // pred_region
      _
    $region17: #{filter_module_forward.1} parent=1 // pred_fallthru
      _
    %s24 = sadd.s32 0, 1
    %p25 = scmp.lt.s32.totalorder %s24, 1
    %s26 = scalar_select %p25, %s24, 1
    %s27 = smul.addr %s26, 2
    %s28 = scalar_lea.vmem %s1, %s27
    %s29 = sadd.s32 0, 1
    %p30 = scmp.lt.s32.totalorder %s29, 1
    %s31 = scalar_select %p30, %s29, 1
    %s32 = smul.addr %s31, 2
    %s33 = scalar_lea.vmem %s1, %s32
    %s34 = sadd.s32 0, 1
    %v35 = vld [vmem:[%s3] sm:$0x1]
    %v37 = vlaneseq
    %v38 = vshrl.u32 %v37, 7
    %v39 = vsub.s32 0, %v38
    %v40 = vrot.slane %v35, %v39
    %v42 = vld [vmem:[%s0] sm:$0x3]
    %43 = vst [vmem:[#allocation2] sm:$0x3] %v42
    %v44 = vld [vmem:[%s33] sm:$0x3]
    %vm45 = vcmask 123904
    %46 = vst.msk [vmem:[#allocation2 + $0x2] sm:$0x3] %vm45, %v44
    %vm47 = vcmask 261120
    %48 = vst.msk [vmem:[#allocation3] sm:$0xff] %vm47, 0.0
    %49 = vst.msk [vmem:[#allocation3 + $0x8] sm:$0xff] %vm47, 0.0
    %50 = vst.msk [vmem:[#allocation3 + $0x10] sm:$0xff] %vm47, 0.0
    %51 = vst.msk [vmem:[#allocation3 + $0x18] sm:$0xff] %vm47, 0.0
    %52 = vst.msk [vmem:[#allocation3 + $0x20] sm:$0xff] %vm47, 0.0
    %v53 = vld [vmem:[#allocation2] sm:$0x3]
    %v54 = vmul.f32 %v53, %v40
    %v57 = vunpack.c.l.s4 1983009808
    %v58 = vunpack.c.0.s8 %v57
    %v59 = vlaneseq
    %v60 = vshrl.u32 %v59, 7
    %v61 = vsub.s32 %v58, %v60
    %v62 = vrot.slane %v54, %v61
    %63 = vrot.lane.b32.xlu0 %v62, 8
    %v64 = vpop.permute.xlu0 %63
    %vm66 = vcmask 189504
    %67 = vst.msk [vmem:[#allocation3] sm:$0x3] %vm66, %v64
    %v68 = vld [vmem:[#allocation2] sm:$0x3]
    %v70 = vunpack.c.l.s4 1983009808
    %v71 = vunpack.c.0.s8 %v70
    %v72 = vlaneseq
    %v73 = vshrl.u32 %v72, 7
    %v74 = vsub.s32 %v71, %v73
    %v75 = vrot.slane %v40, %v74
    %76 = vrot.lane.b32.xlu0 %v75, 8
    %v77 = vpop.permute.xlu0 %76
    %v79 = vmul.f32 %v68, %v77
    %80 = vst.msk [vmem:[#allocation3 + $0x2] sm:$0x3] %vm66, %v79
    %v81 = vld [vmem:[#allocation2] sm:$0x3]
    %82 = vrot.lane.b32.xlu0 %v75, 16
    %v83 = vpop.permute.xlu0 %82
    %v85 = vmul.f32 %v81, %v83
    %v88 = vunpack.c.l.s4 1983009808
    %v89 = vunpack.c.0.s8 %v88
    %v90 = vlaneseq
    %v91 = vshrl.u32 %v90, 7
    %v92 = vsub.s32 %v89, %v91
    %v93 = vrot.slane %v85, %v92
    %94 = vrot.lane.b32.xlu0 %v93, 120
    %v95 = vpop.permute.xlu0 %94
    %97 = vst.msk [vmem:[#allocation3 + $0x4] sm:$0x3] %vm66, %v95
    %v98 = vld [vmem:[#allocation2] sm:$0x3]
    %99 = vrot.lane.b32.xlu0 %v75, 24
    %v100 = vpop.permute.xlu0 %99
    %v102 = vmul.f32 %v98, %v100
    %v105 = vunpack.c.l.s4 1983009808
    %v106 = vunpack.c.0.s8 %v105
    %v107 = vlaneseq
    %v108 = vshrl.u32 %v107, 7
    %v109 = vsub.s32 %v106, %v108
    %v110 = vrot.slane %v102, %v109
    %111 = vrot.lane.b32.xlu0 %v110, 112
    %v112 = vpop.permute.xlu0 %111
    %114 = vst.msk [vmem:[#allocation3 + $0x6] sm:$0x3] %vm66, %v112
    %v115 = vld [vmem:[#allocation2] sm:$0x3]
    %116 = vrot.lane.b32.xlu0 %v75, 32
    %v117 = vpop.permute.xlu0 %116
    %v119 = vmul.f32 %v115, %v117
    %v122 = vunpack.c.l.s4 1983009808
    %v123 = vunpack.c.0.s8 %v122
    %v124 = vlaneseq
    %v125 = vshrl.u32 %v124, 7
    %v126 = vsub.s32 %v123, %v125
    %v127 = vrot.slane %v119, %v126
    %128 = vrot.lane.b32.xlu0 %v127, 104
    %v129 = vpop.permute.xlu0 %128
    %131 = vst.msk [vmem:[#allocation3 + $0x8] sm:$0x3] %vm66, %v129
    %v132 = vld [vmem:[#allocation2] sm:$0x3]
    %133 = vrot.lane.b32.xlu0 %v75, 40
    %v134 = vpop.permute.xlu0 %133
    %v136 = vmul.f32 %v132, %v134
    %v139 = vunpack.c.l.s4 1983009808
    %v140 = vunpack.c.0.s8 %v139
    %v141 = vlaneseq
    %v142 = vshrl.u32 %v141, 7
    %v143 = vsub.s32 %v140, %v142
    %v144 = vrot.slane %v136, %v143
    %145 = vrot.lane.b32.xlu0 %v144, 96
    %v146 = vpop.permute.xlu0 %145
    %148 = vst.msk [vmem:[#allocation3 + $0xa] sm:$0x3] %vm66, %v146
    %v149 = vld [vmem:[#allocation2] sm:$0x3]
    %150 = vrot.lane.b32.xlu0 %v75, 48
    %v151 = vpop.permute.xlu0 %150
    %v153 = vmul.f32 %v149, %v151
    %v156 = vunpack.c.l.s4 1983009808
    %v157 = vunpack.c.0.s8 %v156
    %v158 = vlaneseq
    %v159 = vshrl.u32 %v158, 7
    %v160 = vsub.s32 %v157, %v159
    %v161 = vrot.slane %v153, %v160
    %162 = vrot.lane.b32.xlu0 %v161, 88
    %v163 = vpop.permute.xlu0 %162
    %165 = vst.msk [vmem:[#allocation3 + $0xc] sm:$0x3] %vm66, %v163
    %v166 = vld [vmem:[#allocation2] sm:$0x3]
    %167 = vrot.lane.b32.xlu0 %v75, 56
    %v168 = vpop.permute.xlu0 %167
    %v170 = vmul.f32 %v166, %v168
    %v173 = vunpack.c.l.s4 1983009808
    %v174 = vunpack.c.0.s8 %v173
    %v175 = vlaneseq
    %v176 = vshrl.u32 %v175, 7
    %v177 = vsub.s32 %v174, %v176
    %v178 = vrot.slane %v170, %v177
    %179 = vrot.lane.b32.xlu0 %v178, 80
    %v180 = vpop.permute.xlu0 %179
    %182 = vst.msk [vmem:[#allocation3 + $0xe] sm:$0x3] %vm66, %v180
    %v183 = vld [vmem:[#allocation2] sm:$0x3]
    %184 = vrot.lane.b32.xlu0 %v75, 64
    %v185 = vpop.permute.xlu0 %184
    %v187 = vmul.f32 %v183, %v185
    %v190 = vunpack.c.l.s4 1983009808
    %v191 = vunpack.c.0.s8 %v190
    %v192 = vlaneseq
    %v193 = vshrl.u32 %v192, 7
    %v194 = vsub.s32 %v191, %v193
    %v195 = vrot.slane %v187, %v194
    %196 = vrot.lane.b32.xlu0 %v195, 72
    %v197 = vpop.permute.xlu0 %196
    %199 = vst.msk [vmem:[#allocation3 + $0x10] sm:$0x3] %vm66, %v197
    %v200 = vld [vmem:[#allocation2] sm:$0x3]
    %201 = vrot.lane.b32.xlu0 %v75, 72
    %v202 = vpop.permute.xlu0 %201
    %v204 = vmul.f32 %v200, %v202
    %v207 = vunpack.c.l.s4 1983009808
    %v208 = vunpack.c.0.s8 %v207
    %v209 = vlaneseq
    %v210 = vshrl.u32 %v209, 7
    %v211 = vsub.s32 %v208, %v210
    %v212 = vrot.slane %v204, %v211
    %213 = vrot.lane.b32.xlu0 %v212, 64
    %v214 = vpop.permute.xlu0 %213
    %216 = vst.msk [vmem:[#allocation3 + $0x12] sm:$0x3] %vm66, %v214
    %v217 = vld [vmem:[#allocation2] sm:$0x3]
    %218 = vrot.lane.b32.xlu0 %v75, 80
    %v219 = vpop.permute.xlu0 %218
    %v221 = vmul.f32 %v217, %v219
    %v224 = vunpack.c.l.s4 1983009808
    %v225 = vunpack.c.0.s8 %v224
    %v226 = vlaneseq
    %v227 = vshrl.u32 %v226, 7
    %v228 = vsub.s32 %v225, %v227
    %v229 = vrot.slane %v221, %v228
    %230 = vrot.lane.b32.xlu0 %v229, 56
    %v231 = vpop.permute.xlu0 %230
    %233 = vst.msk [vmem:[#allocation3 + $0x14] sm:$0x3] %vm66, %v231
    %v234 = vld [vmem:[#allocation2] sm:$0x3]
    %235 = vrot.lane.b32.xlu0 %v75, 88
    %v236 = vpop.permute.xlu0 %235
    %v238 = vmul.f32 %v234, %v236
    %v241 = vunpack.c.l.s4 1983009808
    %v242 = vunpack.c.0.s8 %v241
    %v243 = vlaneseq
    %v244 = vshrl.u32 %v243, 7
    %v245 = vsub.s32 %v242, %v244
    %v246 = vrot.slane %v238, %v245
    %247 = vrot.lane.b32.xlu0 %v246, 48
    %v248 = vpop.permute.xlu0 %247
    %250 = vst.msk [vmem:[#allocation3 + $0x16] sm:$0x3] %vm66, %v248
    %v251 = vld [vmem:[#allocation2] sm:$0x3]
    %252 = vrot.lane.b32.xlu0 %v75, 96
    %v253 = vpop.permute.xlu0 %252
    %v255 = vmul.f32 %v251, %v253
    %v258 = vunpack.c.l.s4 1983009808
    %v259 = vunpack.c.0.s8 %v258
    %v260 = vlaneseq
    %v261 = vshrl.u32 %v260, 7
    %v262 = vsub.s32 %v259, %v261
    %v263 = vrot.slane %v255, %v262
    %264 = vrot.lane.b32.xlu0 %v263, 40
    %v265 = vpop.permute.xlu0 %264
    %267 = vst.msk [vmem:[#allocation3 + $0x18] sm:$0x3] %vm66, %v265
    %v268 = vld [vmem:[#allocation2] sm:$0x3]
    %269 = vrot.lane.b32.xlu0 %v75, 104
    %v270 = vpop.permute.xlu0 %269
    %v272 = vmul.f32 %v268, %v270
    %v275 = vunpack.c.l.s4 1983009808
    %v276 = vunpack.c.0.s8 %v275
    %v277 = vlaneseq
    %v278 = vshrl.u32 %v277, 7
    %v279 = vsub.s32 %v276, %v278
    %v280 = vrot.slane %v272, %v279
    %281 = vrot.lane.b32.xlu0 %v280, 32
    %v282 = vpop.permute.xlu0 %281
    %284 = vst.msk [vmem:[#allocation3 + $0x1a] sm:$0x3] %vm66, %v282
    %v285 = vld [vmem:[#allocation2] sm:$0x3]
    %286 = vrot.lane.b32.xlu0 %v75, 112
    %v287 = vpop.permute.xlu0 %286
    %v289 = vmul.f32 %v285, %v287
    %v292 = vunpack.c.l.s4 1983009808
    %v293 = vunpack.c.0.s8 %v292
    %v294 = vlaneseq
    %v295 = vshrl.u32 %v294, 7
    %v296 = vsub.s32 %v293, %v295
    %v297 = vrot.slane %v289, %v296
    %298 = vrot.lane.b32.xlu0 %v297, 24
    %v299 = vpop.permute.xlu0 %298
    %301 = vst.msk [vmem:[#allocation3 + $0x1c] sm:$0x3] %vm66, %v299
    %v302 = vld [vmem:[#allocation2] sm:$0xf]
    %303 = vrot.lane.b32.xlu0 %v75, 120
    %v304 = vpop.permute.xlu0 %303
    %v305 = vrot.slane %v304, 6
    %vm306 = vcmask 982016
    %v307 = vsel %vm306, %v305, %v304
    %v309 = vmul.f32 %v302, %v307
    %v312 = vunpack.c.l.s4 1983009808
    %v313 = vunpack.c.0.s8 %v312
    %v314 = vlaneseq
    %v315 = vshrl.u32 %v314, 7
    %v316 = vsub.s32 %v313, %v315
    %v317 = vrot.slane %v309, %v316
    %v318 = vcombine.high %v317, %v317
    %319 = vrot.lane.b32.xlu0 %v317, 16
    %v320 = vpop.permute.xlu0 %319
    %321 = vrot.lane.b32.xlu0 %v318, 16
    %v322 = vpop.permute.xlu0 %321
    %vm323 = vcmask 130048
    %v324 = vsel %vm323, %v320, %v322
    %326 = vst.msk [vmem:[#allocation3 + $0x1e] sm:$0x3] %vm66, %v324
    %v327 = vld [vmem:[#allocation2 + $0x2] sm:$0x3]
    %v328 = vmul.f32 %v327, %v40
    %v331 = vunpack.c.l.s4 1983009808
    %v332 = vunpack.c.0.s8 %v331
    %v333 = vlaneseq
    %v334 = vshrl.u32 %v333, 7
    %v335 = vsub.s32 %v332, %v334
    %v336 = vrot.slane %v328, %v335
    %337 = vrot.lane.b32.xlu0 %v336, 8
    %v338 = vpop.permute.xlu0 %337
    %340 = vst.msk [vmem:[#allocation3 + $0x20] sm:$0x3] %vm66, %v338
    %v341 = vld [vmem:[%s2] sm:$0xff]
    %v342 = vld [vmem:[%s2 + $0x8] sm:$0xff]
    %v343 = vld [vmem:[%s2 + $0x10] sm:$0xff]
    %v344 = vld [vmem:[%s2 + $0x18] sm:$0xff]
    %v345 = vld [vmem:[%s2 + $0x20] sm:$0xff]
    %v346 = vld [vmem:[#allocation3] sm:$0xff]
    %v347 = vld [vmem:[#allocation3 + $0x8] sm:$0xff]
    %v348 = vld [vmem:[#allocation3 + $0x10] sm:$0xff]
    %v349 = vld [vmem:[#allocation3 + $0x18] sm:$0xff]
    %v350 = vld [vmem:[#allocation3 + $0x20] sm:$0xff]
    %352 = vset.pattern.permute.xlu0 0
    %353 = vperm.xlu0 %352, %v341
    %v354 = vpop.permute.xlu0 %353
    %357 = vset.pattern.permute.xlu0 0
    %358 = vperm.xlu0 %357, %v342
    %v359 = vpop.permute.xlu0 %358
    %362 = vset.pattern.permute.xlu0 0
    %363 = vperm.xlu0 %362, %v343
    %v364 = vpop.permute.xlu0 %363
    %367 = vset.pattern.permute.xlu0 0
    %368 = vperm.xlu0 %367, %v344
    %v369 = vpop.permute.xlu0 %368
    %372 = vset.pattern.permute.xlu0 0
    %373 = vperm.xlu0 %372, %v345
    %v374 = vpop.permute.xlu0 %373
    %v376 = vmul.f32 %v354, %v346
    %v377 = vmul.f32 %v359, %v347
    %v378 = vmul.f32 %v364, %v348
    %v379 = vmul.f32 %v369, %v349
    %v380 = vmul.f32 %v374, %v350
    %v381 = vadd.f32 %v376, 0.0
    %v382 = vadd.f32 %v377, 0.0
    %v383 = vadd.f32 %v378, 0.0
    %v384 = vadd.f32 %v379, 0.0
    %v385 = vadd.f32 %v380, 0.0
    %386 = vset.pattern.permute.xlu0 1
    %387 = vperm.xlu0 %386, %v341
    %v388 = vpop.permute.xlu0 %387
    %390 = vset.pattern.permute.xlu0 1
    %391 = vperm.xlu0 %390, %v342
    %v392 = vpop.permute.xlu0 %391
    %394 = vset.pattern.permute.xlu0 1
    %395 = vperm.xlu0 %394, %v343
    %v396 = vpop.permute.xlu0 %395
    %398 = vset.pattern.permute.xlu0 1
    %399 = vperm.xlu0 %398, %v344
    %v400 = vpop.permute.xlu0 %399
    %402 = vset.pattern.permute.xlu0 1
    %403 = vperm.xlu0 %402, %v345
    %v404 = vpop.permute.xlu0 %403
    %v406 = vmul.f32 %v388, %v346
    %v407 = vmul.f32 %v392, %v347
    %v408 = vmul.f32 %v396, %v348
    %v409 = vmul.f32 %v400, %v349
    %v410 = vmul.f32 %v404, %v350
    %416 = vrot.lane.b32.xlu0 %v406, 127
    %v417 = vpop.permute.xlu0 %416
    %418 = vrot.lane.b32.xlu0 %v407, 127
    %v419 = vpop.permute.xlu0 %418
    %420 = vrot.lane.b32.xlu0 %v408, 127
    %v421 = vpop.permute.xlu0 %420
    %422 = vrot.lane.b32.xlu0 %v409, 127
    %v423 = vpop.permute.xlu0 %422
    %424 = vrot.lane.b32.xlu0 %v410, 127
    %v425 = vpop.permute.xlu0 %424
    %v431 = vadd.f32 %v381, %v417
    %v432 = vadd.f32 %v382, %v419
    %v433 = vadd.f32 %v383, %v421
    %v434 = vadd.f32 %v384, %v423
    %v435 = vadd.f32 %v385, %v425
    %436 = vset.pattern.permute.xlu0 2
    %437 = vperm.xlu0 %436, %v341
    %v438 = vpop.permute.xlu0 %437
    %440 = vset.pattern.permute.xlu0 2
    %441 = vperm.xlu0 %440, %v342
    %v442 = vpop.permute.xlu0 %441
    %444 = vset.pattern.permute.xlu0 2
    %445 = vperm.xlu0 %444, %v343
    %v446 = vpop.permute.xlu0 %445
    %448 = vset.pattern.permute.xlu0 2
    %449 = vperm.xlu0 %448, %v344
    %v450 = vpop.permute.xlu0 %449
    %452 = vset.pattern.permute.xlu0 2
    %453 = vperm.xlu0 %452, %v345
    %v454 = vpop.permute.xlu0 %453
    %v456 = vmul.f32 %v438, %v346
    %v457 = vmul.f32 %v442, %v347
    %v458 = vmul.f32 %v446, %v348
    %v459 = vmul.f32 %v450, %v349
    %v460 = vmul.f32 %v454, %v350
    %466 = vrot.lane.b32.xlu0 %v456, 126
    %v467 = vpop.permute.xlu0 %466
    %468 = vrot.lane.b32.xlu0 %v457, 126
    %v469 = vpop.permute.xlu0 %468
    %470 = vrot.lane.b32.xlu0 %v458, 126
    %v471 = vpop.permute.xlu0 %470
    %472 = vrot.lane.b32.xlu0 %v459, 126
    %v473 = vpop.permute.xlu0 %472
    %474 = vrot.lane.b32.xlu0 %v460, 126
    %v475 = vpop.permute.xlu0 %474
    %v481 = vadd.f32 %v431, %v467
    %v482 = vadd.f32 %v432, %v469
    %v483 = vadd.f32 %v433, %v471
    %v484 = vadd.f32 %v434, %v473
    %v485 = vadd.f32 %v435, %v475
    %486 = vset.pattern.permute.xlu0 3
    %487 = vperm.xlu0 %486, %v341
    %v488 = vpop.permute.xlu0 %487
    %490 = vset.pattern.permute.xlu0 3
    %491 = vperm.xlu0 %490, %v342
    %v492 = vpop.permute.xlu0 %491
    %494 = vset.pattern.permute.xlu0 3
    %495 = vperm.xlu0 %494, %v343
    %v496 = vpop.permute.xlu0 %495
    %498 = vset.pattern.permute.xlu0 3
    %499 = vperm.xlu0 %498, %v344
    %v500 = vpop.permute.xlu0 %499
    %502 = vset.pattern.permute.xlu0 3
    %503 = vperm.xlu0 %502, %v345
    %v504 = vpop.permute.xlu0 %503
    %v506 = vmul.f32 %v488, %v346
    %v507 = vmul.f32 %v492, %v347
    %v508 = vmul.f32 %v496, %v348
    %v509 = vmul.f32 %v500, %v349
    %v510 = vmul.f32 %v504, %v350
    %516 = vrot.lane.b32.xlu0 %v506, 125
    %v517 = vpop.permute.xlu0 %516
    %518 = vrot.lane.b32.xlu0 %v507, 125
    %v519 = vpop.permute.xlu0 %518
    %520 = vrot.lane.b32.xlu0 %v508, 125
    %v521 = vpop.permute.xlu0 %520
    %522 = vrot.lane.b32.xlu0 %v509, 125
    %v523 = vpop.permute.xlu0 %522
    %524 = vrot.lane.b32.xlu0 %v510, 125
    %v525 = vpop.permute.xlu0 %524
    %v531 = vadd.f32 %v481, %v517
    %v532 = vadd.f32 %v482, %v519
    %v533 = vadd.f32 %v483, %v521
    %v534 = vadd.f32 %v484, %v523
    %v535 = vadd.f32 %v485, %v525
    %536 = vset.pattern.permute.xlu0 4
    %537 = vperm.xlu0 %536, %v341
    %v538 = vpop.permute.xlu0 %537
    %540 = vset.pattern.permute.xlu0 4
    %541 = vperm.xlu0 %540, %v342
    %v542 = vpop.permute.xlu0 %541
    %544 = vset.pattern.permute.xlu0 4
    %545 = vperm.xlu0 %544, %v343
    %v546 = vpop.permute.xlu0 %545
    %548 = vset.pattern.permute.xlu0 4
    %549 = vperm.xlu0 %548, %v344
    %v550 = vpop.permute.xlu0 %549
    %552 = vset.pattern.permute.xlu0 4
    %553 = vperm.xlu0 %552, %v345
    %v554 = vpop.permute.xlu0 %553
    %v556 = vmul.f32 %v538, %v346
    %v557 = vmul.f32 %v542, %v347
    %v558 = vmul.f32 %v546, %v348
    %v559 = vmul.f32 %v550, %v349
    %v560 = vmul.f32 %v554, %v350
    %566 = vrot.lane.b32.xlu0 %v556, 124
    %v567 = vpop.permute.xlu0 %566
    %568 = vrot.lane.b32.xlu0 %v557, 124
    %v569 = vpop.permute.xlu0 %568
    %570 = vrot.lane.b32.xlu0 %v558, 124
    %v571 = vpop.permute.xlu0 %570
    %572 = vrot.lane.b32.xlu0 %v559, 124
    %v573 = vpop.permute.xlu0 %572
    %574 = vrot.lane.b32.xlu0 %v560, 124
    %v575 = vpop.permute.xlu0 %574
    %v581 = vadd.f32 %v531, %v567
    %v582 = vadd.f32 %v532, %v569
    %v583 = vadd.f32 %v533, %v571
    %v584 = vadd.f32 %v534, %v573
    %v585 = vadd.f32 %v535, %v575
    %586 = vset.pattern.permute.xlu0 5
    %587 = vperm.xlu0 %586, %v341
    %v588 = vpop.permute.xlu0 %587
    %590 = vset.pattern.permute.xlu0 5
    %591 = vperm.xlu0 %590, %v342
    %v592 = vpop.permute.xlu0 %591
    %594 = vset.pattern.permute.xlu0 5
    %595 = vperm.xlu0 %594, %v343
    %v596 = vpop.permute.xlu0 %595
    %598 = vset.pattern.permute.xlu0 5
    %599 = vperm.xlu0 %598, %v344
    %v600 = vpop.permute.xlu0 %599
    %602 = vset.pattern.permute.xlu0 5
    %603 = vperm.xlu0 %602, %v345
    %v604 = vpop.permute.xlu0 %603
    %v606 = vmul.f32 %v588, %v346
    %v607 = vmul.f32 %v592, %v347
    %v608 = vmul.f32 %v596, %v348
    %v609 = vmul.f32 %v600, %v349
    %v610 = vmul.f32 %v604, %v350
    %616 = vrot.lane.b32.xlu0 %v606, 123
    %v617 = vpop.permute.xlu0 %616
    %618 = vrot.lane.b32.xlu0 %v607, 123
    %v619 = vpop.permute.xlu0 %618
    %620 = vrot.lane.b32.xlu0 %v608, 123
    %v621 = vpop.permute.xlu0 %620
    %622 = vrot.lane.b32.xlu0 %v609, 123
    %v623 = vpop.permute.xlu0 %622
    %624 = vrot.lane.b32.xlu0 %v610, 123
    %v625 = vpop.permute.xlu0 %624
    %v631 = vadd.f32 %v581, %v617
    %v632 = vadd.f32 %v582, %v619
    %v633 = vadd.f32 %v583, %v621
    %v634 = vadd.f32 %v584, %v623
    %v635 = vadd.f32 %v585, %v625
    %636 = vset.pattern.permute.xlu0 6
    %637 = vperm.xlu0 %636, %v341
    %v638 = vpop.permute.xlu0 %637
    %640 = vset.pattern.permute.xlu0 6
    %641 = vperm.xlu0 %640, %v342
    %v642 = vpop.permute.xlu0 %641
    %644 = vset.pattern.permute.xlu0 6
    %645 = vperm.xlu0 %644, %v343
    %v646 = vpop.permute.xlu0 %645
    %648 = vset.pattern.permute.xlu0 6
    %649 = vperm.xlu0 %648, %v344
    %v650 = vpop.permute.xlu0 %649
    %652 = vset.pattern.permute.xlu0 6
    %653 = vperm.xlu0 %652, %v345
    %v654 = vpop.permute.xlu0 %653
    %v656 = vmul.f32 %v638, %v346
    %v657 = vmul.f32 %v642, %v347
    %v658 = vmul.f32 %v646, %v348
    %v659 = vmul.f32 %v650, %v349
    %v660 = vmul.f32 %v654, %v350
    %666 = vrot.lane.b32.xlu0 %v656, 122
    %v667 = vpop.permute.xlu0 %666
    %668 = vrot.lane.b32.xlu0 %v657, 122
    %v669 = vpop.permute.xlu0 %668
    %670 = vrot.lane.b32.xlu0 %v658, 122
    %v671 = vpop.permute.xlu0 %670
    %672 = vrot.lane.b32.xlu0 %v659, 122
    %v673 = vpop.permute.xlu0 %672
    %674 = vrot.lane.b32.xlu0 %v660, 122
    %v675 = vpop.permute.xlu0 %674
    %v681 = vadd.f32 %v631, %v667
    %v682 = vadd.f32 %v632, %v669
    %v683 = vadd.f32 %v633, %v671
    %v684 = vadd.f32 %v634, %v673
    %v685 = vadd.f32 %v635, %v675
    %686 = vset.pattern.permute.xlu0 7
    %687 = vperm.xlu0 %686, %v341
    %v688 = vpop.permute.xlu0 %687
    %690 = vset.pattern.permute.xlu0 7
    %691 = vperm.xlu0 %690, %v342
    %v692 = vpop.permute.xlu0 %691
    %694 = vset.pattern.permute.xlu0 7
    %695 = vperm.xlu0 %694, %v343
    %v696 = vpop.permute.xlu0 %695
    %698 = vset.pattern.permute.xlu0 7
    %699 = vperm.xlu0 %698, %v344
    %v700 = vpop.permute.xlu0 %699
    %702 = vset.pattern.permute.xlu0 7
    %703 = vperm.xlu0 %702, %v345
    %v704 = vpop.permute.xlu0 %703
    %v706 = vmul.f32 %v688, %v346
    %v707 = vmul.f32 %v692, %v347
    %v708 = vmul.f32 %v696, %v348
    %v709 = vmul.f32 %v700, %v349
    %v710 = vmul.f32 %v704, %v350
    %716 = vrot.lane.b32.xlu0 %v706, 121
    %v717 = vpop.permute.xlu0 %716
    %718 = vrot.lane.b32.xlu0 %v707, 121
    %v719 = vpop.permute.xlu0 %718
    %720 = vrot.lane.b32.xlu0 %v708, 121
    %v721 = vpop.permute.xlu0 %720
    %722 = vrot.lane.b32.xlu0 %v709, 121
    %v723 = vpop.permute.xlu0 %722
    %724 = vrot.lane.b32.xlu0 %v710, 121
    %v725 = vpop.permute.xlu0 %724
    %v731 = vadd.f32 %v681, %v717
    %v732 = vadd.f32 %v682, %v719
    %v733 = vadd.f32 %v683, %v721
    %v734 = vadd.f32 %v684, %v723
    %v735 = vadd.f32 %v685, %v725
    %736 = vset.pattern.permute.xlu0 8
    %737 = vperm.xlu0 %736, %v341
    %v738 = vpop.permute.xlu0 %737
    %740 = vset.pattern.permute.xlu0 8
    %741 = vperm.xlu0 %740, %v342
    %v742 = vpop.permute.xlu0 %741
    %744 = vset.pattern.permute.xlu0 8
    %745 = vperm.xlu0 %744, %v343
    %v746 = vpop.permute.xlu0 %745
    %748 = vset.pattern.permute.xlu0 8
    %749 = vperm.xlu0 %748, %v344
    %v750 = vpop.permute.xlu0 %749
    %752 = vset.pattern.permute.xlu0 8
    %753 = vperm.xlu0 %752, %v345
    %v754 = vpop.permute.xlu0 %753
    %v756 = vmul.f32 %v738, %v346
    %v757 = vmul.f32 %v742, %v347
    %v758 = vmul.f32 %v746, %v348
    %v759 = vmul.f32 %v750, %v349
    %v760 = vmul.f32 %v754, %v350
    %766 = vrot.lane.b32.xlu0 %v756, 120
    %v767 = vpop.permute.xlu0 %766
    %768 = vrot.lane.b32.xlu0 %v757, 120
    %v769 = vpop.permute.xlu0 %768
    %770 = vrot.lane.b32.xlu0 %v758, 120
    %v771 = vpop.permute.xlu0 %770
    %772 = vrot.lane.b32.xlu0 %v759, 120
    %v773 = vpop.permute.xlu0 %772
    %774 = vrot.lane.b32.xlu0 %v760, 120
    %v775 = vpop.permute.xlu0 %774
    %v781 = vadd.f32 %v731, %v767
    %v782 = vadd.f32 %v732, %v769
    %v783 = vadd.f32 %v733, %v771
    %v784 = vadd.f32 %v734, %v773
    %v785 = vadd.f32 %v735, %v775
    %786 = vset.pattern.permute.xlu0 9
    %787 = vperm.xlu0 %786, %v341
    %v788 = vpop.permute.xlu0 %787
    %790 = vset.pattern.permute.xlu0 9
    %791 = vperm.xlu0 %790, %v342
    %v792 = vpop.permute.xlu0 %791
    %794 = vset.pattern.permute.xlu0 9
    %795 = vperm.xlu0 %794, %v343
    %v796 = vpop.permute.xlu0 %795
    %798 = vset.pattern.permute.xlu0 9
    %799 = vperm.xlu0 %798, %v344
    %v800 = vpop.permute.xlu0 %799
    %802 = vset.pattern.permute.xlu0 9
    %803 = vperm.xlu0 %802, %v345
    %v804 = vpop.permute.xlu0 %803
    %v806 = vmul.f32 %v788, %v346
    %v807 = vmul.f32 %v792, %v347
    %v808 = vmul.f32 %v796, %v348
    %v809 = vmul.f32 %v800, %v349
    %v810 = vmul.f32 %v804, %v350
    %816 = vrot.lane.b32.xlu0 %v806, 119
    %v817 = vpop.permute.xlu0 %816
    %818 = vrot.lane.b32.xlu0 %v807, 119
    %v819 = vpop.permute.xlu0 %818
    %820 = vrot.lane.b32.xlu0 %v808, 119
    %v821 = vpop.permute.xlu0 %820
    %822 = vrot.lane.b32.xlu0 %v809, 119
    %v823 = vpop.permute.xlu0 %822
    %824 = vrot.lane.b32.xlu0 %v810, 119
    %v825 = vpop.permute.xlu0 %824
    %v831 = vadd.f32 %v781, %v817
    %v832 = vadd.f32 %v782, %v819
    %v833 = vadd.f32 %v783, %v821
    %v834 = vadd.f32 %v784, %v823
    %v835 = vadd.f32 %v785, %v825
    %836 = vset.pattern.permute.xlu0 10
    %837 = vperm.xlu0 %836, %v341
    %v838 = vpop.permute.xlu0 %837
    %840 = vset.pattern.permute.xlu0 10
    %841 = vperm.xlu0 %840, %v342
    %v842 = vpop.permute.xlu0 %841
    %844 = vset.pattern.permute.xlu0 10
    %845 = vperm.xlu0 %844, %v343
    %v846 = vpop.permute.xlu0 %845
    %848 = vset.pattern.permute.xlu0 10
    %849 = vperm.xlu0 %848, %v344
    %v850 = vpop.permute.xlu0 %849
    %852 = vset.pattern.permute.xlu0 10
    %853 = vperm.xlu0 %852, %v345
    %v854 = vpop.permute.xlu0 %853
    %v856 = vmul.f32 %v838, %v346
    %v857 = vmul.f32 %v842, %v347
    %v858 = vmul.f32 %v846, %v348
    %v859 = vmul.f32 %v850, %v349
    %v860 = vmul.f32 %v854, %v350
    %866 = vrot.lane.b32.xlu0 %v856, 118
    %v867 = vpop.permute.xlu0 %866
    %868 = vrot.lane.b32.xlu0 %v857, 118
    %v869 = vpop.permute.xlu0 %868
    %870 = vrot.lane.b32.xlu0 %v858, 118
    %v871 = vpop.permute.xlu0 %870
    %872 = vrot.lane.b32.xlu0 %v859, 118
    %v873 = vpop.permute.xlu0 %872
    %874 = vrot.lane.b32.xlu0 %v860, 118
    %v875 = vpop.permute.xlu0 %874
    %v881 = vadd.f32 %v831, %v867
    %v882 = vadd.f32 %v832, %v869
    %v883 = vadd.f32 %v833, %v871
    %v884 = vadd.f32 %v834, %v873
    %v885 = vadd.f32 %v835, %v875
    %886 = vset.pattern.permute.xlu0 11
    %887 = vperm.xlu0 %886, %v341
    %v888 = vpop.permute.xlu0 %887
    %890 = vset.pattern.permute.xlu0 11
    %891 = vperm.xlu0 %890, %v342
    %v892 = vpop.permute.xlu0 %891
    %894 = vset.pattern.permute.xlu0 11
    %895 = vperm.xlu0 %894, %v343
    %v896 = vpop.permute.xlu0 %895
    %898 = vset.pattern.permute.xlu0 11
    %899 = vperm.xlu0 %898, %v344
    %v900 = vpop.permute.xlu0 %899
    %902 = vset.pattern.permute.xlu0 11
    %903 = vperm.xlu0 %902, %v345
    %v904 = vpop.permute.xlu0 %903
    %v906 = vmul.f32 %v888, %v346
    %v907 = vmul.f32 %v892, %v347
    %v908 = vmul.f32 %v896, %v348
    %v909 = vmul.f32 %v900, %v349
    %v910 = vmul.f32 %v904, %v350
    %916 = vrot.lane.b32.xlu0 %v906, 117
    %v917 = vpop.permute.xlu0 %916
    %918 = vrot.lane.b32.xlu0 %v907, 117
    %v919 = vpop.permute.xlu0 %918
    %920 = vrot.lane.b32.xlu0 %v908, 117
    %v921 = vpop.permute.xlu0 %920
    %922 = vrot.lane.b32.xlu0 %v909, 117
    %v923 = vpop.permute.xlu0 %922
    %924 = vrot.lane.b32.xlu0 %v910, 117
    %v925 = vpop.permute.xlu0 %924
    %v931 = vadd.f32 %v881, %v917
    %v932 = vadd.f32 %v882, %v919
    %v933 = vadd.f32 %v883, %v921
    %v934 = vadd.f32 %v884, %v923
    %v935 = vadd.f32 %v885, %v925
    %936 = vset.pattern.permute.xlu0 12
    %937 = vperm.xlu0 %936, %v341
    %v938 = vpop.permute.xlu0 %937
    %940 = vset.pattern.permute.xlu0 12
    %941 = vperm.xlu0 %940, %v342
    %v942 = vpop.permute.xlu0 %941
    %944 = vset.pattern.permute.xlu0 12
    %945 = vperm.xlu0 %944, %v343
    %v946 = vpop.permute.xlu0 %945
    %948 = vset.pattern.permute.xlu0 12
    %949 = vperm.xlu0 %948, %v344
    %v950 = vpop.permute.xlu0 %949
    %952 = vset.pattern.permute.xlu0 12
    %953 = vperm.xlu0 %952, %v345
    %v954 = vpop.permute.xlu0 %953
    %v956 = vmul.f32 %v938, %v346
    %v957 = vmul.f32 %v942, %v347
    %v958 = vmul.f32 %v946, %v348
    %v959 = vmul.f32 %v950, %v349
    %v960 = vmul.f32 %v954, %v350
    %966 = vrot.lane.b32.xlu0 %v956, 116
    %v967 = vpop.permute.xlu0 %966
    %968 = vrot.lane.b32.xlu0 %v957, 116
    %v969 = vpop.permute.xlu0 %968
    %970 = vrot.lane.b32.xlu0 %v958, 116
    %v971 = vpop.permute.xlu0 %970
    %972 = vrot.lane.b32.xlu0 %v959, 116
    %v973 = vpop.permute.xlu0 %972
    %974 = vrot.lane.b32.xlu0 %v960, 116
    %v975 = vpop.permute.xlu0 %974
    %v981 = vadd.f32 %v931, %v967
    %v982 = vadd.f32 %v932, %v969
    %v983 = vadd.f32 %v933, %v971
    %v984 = vadd.f32 %v934, %v973
    %v985 = vadd.f32 %v935, %v975
    %986 = vset.pattern.permute.xlu0 13
    %987 = vperm.xlu0 %986, %v341
    %v988 = vpop.permute.xlu0 %987
    %990 = vset.pattern.permute.xlu0 13
    %991 = vperm.xlu0 %990, %v342
    %v992 = vpop.permute.xlu0 %991
    %994 = vset.pattern.permute.xlu0 13
    %995 = vperm.xlu0 %994, %v343
    %v996 = vpop.permute.xlu0 %995
    %998 = vset.pattern.permute.xlu0 13
    %999 = vperm.xlu0 %998, %v344
    %v1000 = vpop.permute.xlu0 %999
    %1002 = vset.pattern.permute.xlu0 13
    %1003 = vperm.xlu0 %1002, %v345
    %v1004 = vpop.permute.xlu0 %1003
    %v1006 = vmul.f32 %v988, %v346
    %v1007 = vmul.f32 %v992, %v347
    %v1008 = vmul.f32 %v996, %v348
    %v1009 = vmul.f32 %v1000, %v349
    %v1010 = vmul.f32 %v1004, %v350
    %1016 = vrot.lane.b32.xlu0 %v1006, 115
    %v1017 = vpop.permute.xlu0 %1016
    %1018 = vrot.lane.b32.xlu0 %v1007, 115
    %v1019 = vpop.permute.xlu0 %1018
    %1020 = vrot.lane.b32.xlu0 %v1008, 115
    %v1021 = vpop.permute.xlu0 %1020
    %1022 = vrot.lane.b32.xlu0 %v1009, 115
    %v1023 = vpop.permute.xlu0 %1022
    %1024 = vrot.lane.b32.xlu0 %v1010, 115
    %v1025 = vpop.permute.xlu0 %1024
    %v1031 = vadd.f32 %v981, %v1017
    %v1032 = vadd.f32 %v982, %v1019
    %v1033 = vadd.f32 %v983, %v1021
    %v1034 = vadd.f32 %v984, %v1023
    %v1035 = vadd.f32 %v985, %v1025
    %1036 = vset.pattern.permute.xlu0 14
    %1037 = vperm.xlu0 %1036, %v341
    %v1038 = vpop.permute.xlu0 %1037
    %1040 = vset.pattern.permute.xlu0 14
    %1041 = vperm.xlu0 %1040, %v342
    %v1042 = vpop.permute.xlu0 %1041
    %1044 = vset.pattern.permute.xlu0 14
    %1045 = vperm.xlu0 %1044, %v343
    %v1046 = vpop.permute.xlu0 %1045
    %1048 = vset.pattern.permute.xlu0 14
    %1049 = vperm.xlu0 %1048, %v344
    %v1050 = vpop.permute.xlu0 %1049
    %1052 = vset.pattern.permute.xlu0 14
    %1053 = vperm.xlu0 %1052, %v345
    %v1054 = vpop.permute.xlu0 %1053
    %v1056 = vmul.f32 %v1038, %v346
    %v1057 = vmul.f32 %v1042, %v347
    %v1058 = vmul.f32 %v1046, %v348
    %v1059 = vmul.f32 %v1050, %v349
    %v1060 = vmul.f32 %v1054, %v350
    %1066 = vrot.lane.b32.xlu0 %v1056, 114
    %v1067 = vpop.permute.xlu0 %1066
    %1068 = vrot.lane.b32.xlu0 %v1057, 114
    %v1069 = vpop.permute.xlu0 %1068
    %1070 = vrot.lane.b32.xlu0 %v1058, 114
    %v1071 = vpop.permute.xlu0 %1070
    %1072 = vrot.lane.b32.xlu0 %v1059, 114
    %v1073 = vpop.permute.xlu0 %1072
    %1074 = vrot.lane.b32.xlu0 %v1060, 114
    %v1075 = vpop.permute.xlu0 %1074
    %v1081 = vadd.f32 %v1031, %v1067
    %v1082 = vadd.f32 %v1032, %v1069
    %v1083 = vadd.f32 %v1033, %v1071
    %v1084 = vadd.f32 %v1034, %v1073
    %v1085 = vadd.f32 %v1035, %v1075
    %1086 = vset.pattern.permute.xlu0 15
    %1087 = vperm.xlu0 %1086, %v341
    %v1088 = vpop.permute.xlu0 %1087
    %1090 = vset.pattern.permute.xlu0 15
    %1091 = vperm.xlu0 %1090, %v342
    %v1092 = vpop.permute.xlu0 %1091
    %1094 = vset.pattern.permute.xlu0 15
    %1095 = vperm.xlu0 %1094, %v343
    %v1096 = vpop.permute.xlu0 %1095
    %1098 = vset.pattern.permute.xlu0 15
    %1099 = vperm.xlu0 %1098, %v344
    %v1100 = vpop.permute.xlu0 %1099
    %1102 = vset.pattern.permute.xlu0 15
    %1103 = vperm.xlu0 %1102, %v345
    %v1104 = vpop.permute.xlu0 %1103
    %v1106 = vmul.f32 %v1088, %v346
    %v1107 = vmul.f32 %v1092, %v347
    %v1108 = vmul.f32 %v1096, %v348
    %v1109 = vmul.f32 %v1100, %v349
    %v1110 = vmul.f32 %v1104, %v350
    %1116 = vrot.lane.b32.xlu0 %v1106, 113
    %v1117 = vpop.permute.xlu0 %1116
    %1118 = vrot.lane.b32.xlu0 %v1107, 113
    %v1119 = vpop.permute.xlu0 %1118
    %1120 = vrot.lane.b32.xlu0 %v1108, 113
    %v1121 = vpop.permute.xlu0 %1120
    %1122 = vrot.lane.b32.xlu0 %v1109, 113
    %v1123 = vpop.permute.xlu0 %1122
    %1124 = vrot.lane.b32.xlu0 %v1110, 113
    %v1125 = vpop.permute.xlu0 %1124
    %v1131 = vadd.f32 %v1081, %v1117
    %v1132 = vadd.f32 %v1082, %v1119
    %v1133 = vadd.f32 %v1083, %v1121
    %v1134 = vadd.f32 %v1084, %v1123
    %v1135 = vadd.f32 %v1085, %v1125
    %1136 = vset.pattern.permute.xlu0 16
    %1137 = vperm.xlu0 %1136, %v341
    %v1138 = vpop.permute.xlu0 %1137
    %1140 = vset.pattern.permute.xlu0 16
    %1141 = vperm.xlu0 %1140, %v342
    %v1142 = vpop.permute.xlu0 %1141
    %1144 = vset.pattern.permute.xlu0 16
    %1145 = vperm.xlu0 %1144, %v343
    %v1146 = vpop.permute.xlu0 %1145
    %1148 = vset.pattern.permute.xlu0 16
    %1149 = vperm.xlu0 %1148, %v344
    %v1150 = vpop.permute.xlu0 %1149
    %1152 = vset.pattern.permute.xlu0 16
    %1153 = vperm.xlu0 %1152, %v345
    %v1154 = vpop.permute.xlu0 %1153
    %v1156 = vmul.f32 %v1138, %v346
    %v1157 = vmul.f32 %v1142, %v347
    %v1158 = vmul.f32 %v1146, %v348
    %v1159 = vmul.f32 %v1150, %v349
    %v1160 = vmul.f32 %v1154, %v350
    %1166 = vrot.lane.b32.xlu0 %v1156, 112
    %v1167 = vpop.permute.xlu0 %1166
    %1168 = vrot.lane.b32.xlu0 %v1157, 112
    %v1169 = vpop.permute.xlu0 %1168
    %1170 = vrot.lane.b32.xlu0 %v1158, 112
    %v1171 = vpop.permute.xlu0 %1170
    %1172 = vrot.lane.b32.xlu0 %v1159, 112
    %v1173 = vpop.permute.xlu0 %1172
    %1174 = vrot.lane.b32.xlu0 %v1160, 112
    %v1175 = vpop.permute.xlu0 %1174
    %v1181 = vadd.f32 %v1131, %v1167
    %v1182 = vadd.f32 %v1132, %v1169
    %v1183 = vadd.f32 %v1133, %v1171
    %v1184 = vadd.f32 %v1134, %v1173
    %v1185 = vadd.f32 %v1135, %v1175
    %v1186 = vmul.f32 %v1181, %v40
    %v1187 = vmul.f32 %v1182, %v40
    %v1188 = vmul.f32 %v1183, %v40
    %v1189 = vmul.f32 %v1184, %v40
    %v1190 = vmul.f32 %v1185, %v40
    %1191 = vst.msk [vmem:[#allocation4] sm:$0xff] %vm323, %v1186
    %1192 = vst.msk [vmem:[#allocation4 + $0x8] sm:$0xff] %vm323, %v1187
    %1193 = vst.msk [vmem:[#allocation4 + $0x10] sm:$0xff] %vm323, %v1188
    %1194 = vst.msk [vmem:[#allocation4 + $0x18] sm:$0xff] %vm323, %v1189
    %1195 = vst.msk [vmem:[#allocation4 + $0x20] sm:$0xff] %vm323, %v1190
    %v1196 = vld [vmem:[#allocation4] sm:$0x3]
    %v1197 = vld [vmem:[#allocation4 + $0x2] sm:$0x3]
    %1199 = vrot.lane.b32.xlu0 %v1197, 8
    %v1200 = vpop.permute.xlu0 %1199
    %v1202 = vadd.f32 %v1196, %v1200
    %1204 = vrot.lane.b32.xlu0 %v1202, 120
    %v1205 = vpop.permute.xlu0 %1204
    %vm1207 = vcmask 58368
    %1208 = vst.msk [vmem:[#allocation5] sm:$0x3] %vm1207, %v1205
    %v1209 = vld [vmem:[#allocation4 + $0x2] sm:$0x3]
    %v1210 = vld [vmem:[#allocation4 + $0x4] sm:$0x3]
    %1212 = vrot.lane.b32.xlu0 %v1210, 8
    %v1213 = vpop.permute.xlu0 %1212
    %v1215 = vadd.f32 %v1209, %v1213
    %vm1216 = vcmask 123968
    %1217 = vst.msk [vmem:[#allocation5] sm:$0x3] %vm1216, %v1215
    %v1218 = vld [vmem:[#allocation4 + $0x4] sm:$0x3]
    %v1219 = vld [vmem:[#allocation4 + $0x6] sm:$0x3]
    %1221 = vrot.lane.b32.xlu0 %v1219, 8
    %v1222 = vpop.permute.xlu0 %1221
    %v1224 = vadd.f32 %v1218, %v1222
    %1226 = vrot.lane.b32.xlu0 %v1224, 8
    %v1227 = vpop.permute.xlu0 %1226
    %vm1229 = vcmask 189568
    %1230 = vst.msk [vmem:[#allocation5] sm:$0x3] %vm1229, %v1227
    %v1231 = vld [vmem:[#allocation4 + $0x6] sm:$0x3]
    %v1232 = vld [vmem:[#allocation4 + $0x8] sm:$0x3]
    %1234 = vrot.lane.b32.xlu0 %v1232, 8
    %v1235 = vpop.permute.xlu0 %1234
    %v1237 = vadd.f32 %v1231, %v1235
    %1239 = vrot.lane.b32.xlu0 %v1237, 16
    %v1240 = vpop.permute.xlu0 %1239
    %vm1242 = vcmask 255168
    %1243 = vst.msk [vmem:[#allocation5] sm:$0x3] %vm1242, %v1240
    %v1244 = vld [vmem:[#allocation4 + $0x8] sm:$0x3]
    %v1245 = vld [vmem:[#allocation4 + $0xa] sm:$0x3]
    %1247 = vrot.lane.b32.xlu0 %v1245, 8
    %v1248 = vpop.permute.xlu0 %1247
    %v1250 = vadd.f32 %v1244, %v1248
    %1252 = vrot.lane.b32.xlu0 %v1250, 24
    %v1253 = vpop.permute.xlu0 %1252
    %vm1255 = vcmask 320768
    %1256 = vst.msk [vmem:[#allocation5] sm:$0x3] %vm1255, %v1253
    %v1257 = vld [vmem:[#allocation4 + $0xa] sm:$0x3]
    %v1258 = vld [vmem:[#allocation4 + $0xc] sm:$0x3]
    %1260 = vrot.lane.b32.xlu0 %v1258, 8
    %v1261 = vpop.permute.xlu0 %1260
    %v1263 = vadd.f32 %v1257, %v1261
    %1265 = vrot.lane.b32.xlu0 %v1263, 32
    %v1266 = vpop.permute.xlu0 %1265
    %vm1268 = vcmask 386368
    %1269 = vst.msk [vmem:[#allocation5] sm:$0x3] %vm1268, %v1266
    %v1270 = vld [vmem:[#allocation4 + $0xc] sm:$0x3]
    %v1271 = vld [vmem:[#allocation4 + $0xe] sm:$0x3]
    %1273 = vrot.lane.b32.xlu0 %v1271, 8
    %v1274 = vpop.permute.xlu0 %1273
    %v1276 = vadd.f32 %v1270, %v1274
    %1278 = vrot.lane.b32.xlu0 %v1276, 40
    %v1279 = vpop.permute.xlu0 %1278
    %vm1281 = vcmask 451968
    %1282 = vst.msk [vmem:[#allocation5] sm:$0x3] %vm1281, %v1279
    %v1283 = vld [vmem:[#allocation4 + $0xe] sm:$0x3]
    %v1284 = vld [vmem:[#allocation4 + $0x10] sm:$0x3]
    %1286 = vrot.lane.b32.xlu0 %v1284, 8
    %v1287 = vpop.permute.xlu0 %1286
    %v1289 = vadd.f32 %v1283, %v1287
    %1291 = vrot.lane.b32.xlu0 %v1289, 48
    %v1292 = vpop.permute.xlu0 %1291
    %vm1294 = vcmask 517568
    %1295 = vst.msk [vmem:[#allocation5] sm:$0x3] %vm1294, %v1292
    %v1296 = vld [vmem:[#allocation4 + $0x10] sm:$0x3]
    %v1297 = vld [vmem:[#allocation4 + $0x12] sm:$0x3]
    %1299 = vrot.lane.b32.xlu0 %v1297, 8
    %v1300 = vpop.permute.xlu0 %1299
    %v1302 = vadd.f32 %v1296, %v1300
    %1304 = vrot.lane.b32.xlu0 %v1302, 56
    %v1305 = vpop.permute.xlu0 %1304
    %vm1307 = vcmask 583168
    %1308 = vst.msk [vmem:[#allocation5] sm:$0x3] %vm1307, %v1305
    %v1309 = vld [vmem:[#allocation4 + $0x12] sm:$0x3]
    %v1310 = vld [vmem:[#allocation4 + $0x14] sm:$0x3]
    %1312 = vrot.lane.b32.xlu0 %v1310, 8
    %v1313 = vpop.permute.xlu0 %1312
    %v1315 = vadd.f32 %v1309, %v1313
    %1317 = vrot.lane.b32.xlu0 %v1315, 64
    %v1318 = vpop.permute.xlu0 %1317
    %vm1320 = vcmask 648768
    %1321 = vst.msk [vmem:[#allocation5] sm:$0x3] %vm1320, %v1318
    %v1322 = vld [vmem:[#allocation4 + $0x14] sm:$0x3]
    %v1323 = vld [vmem:[#allocation4 + $0x16] sm:$0x3]
    %1325 = vrot.lane.b32.xlu0 %v1323, 8
    %v1326 = vpop.permute.xlu0 %1325
    %v1328 = vadd.f32 %v1322, %v1326
    %1330 = vrot.lane.b32.xlu0 %v1328, 72
    %v1331 = vpop.permute.xlu0 %1330
    %vm1333 = vcmask 714368
    %1334 = vst.msk [vmem:[#allocation5] sm:$0x3] %vm1333, %v1331
    %v1335 = vld [vmem:[#allocation4 + $0x16] sm:$0x3]
    %v1336 = vld [vmem:[#allocation4 + $0x18] sm:$0x3]
    %1338 = vrot.lane.b32.xlu0 %v1336, 8
    %v1339 = vpop.permute.xlu0 %1338
    %v1341 = vadd.f32 %v1335, %v1339
    %1343 = vrot.lane.b32.xlu0 %v1341, 80
    %v1344 = vpop.permute.xlu0 %1343
    %vm1346 = vcmask 779968
    %1347 = vst.msk [vmem:[#allocation5] sm:$0x3] %vm1346, %v1344
    %v1348 = vld [vmem:[#allocation4 + $0x18] sm:$0x3]
    %v1349 = vld [vmem:[#allocation4 + $0x1a] sm:$0x3]
    %1351 = vrot.lane.b32.xlu0 %v1349, 8
    %v1352 = vpop.permute.xlu0 %1351
    %v1354 = vadd.f32 %v1348, %v1352
    %1356 = vrot.lane.b32.xlu0 %v1354, 88
    %v1357 = vpop.permute.xlu0 %1356
    %vm1359 = vcmask 845568
    %1360 = vst.msk [vmem:[#allocation5] sm:$0x3] %vm1359, %v1357
    %v1361 = vld [vmem:[#allocation4 + $0x1a] sm:$0x3]
    %v1362 = vld [vmem:[#allocation4 + $0x1c] sm:$0x3]
    %1364 = vrot.lane.b32.xlu0 %v1362, 8
    %v1365 = vpop.permute.xlu0 %1364
    %v1367 = vadd.f32 %v1361, %v1365
    %1369 = vrot.lane.b32.xlu0 %v1367, 96
    %v1370 = vpop.permute.xlu0 %1369
    %vm1372 = vcmask 911168
    %1373 = vst.msk [vmem:[#allocation5] sm:$0x3] %vm1372, %v1370
    %v1374 = vld [vmem:[#allocation4 + $0x1c] sm:$0x3]
    %v1375 = vld [vmem:[#allocation4 + $0x1e] sm:$0x3]
    %1377 = vrot.lane.b32.xlu0 %v1375, 8
    %v1378 = vpop.permute.xlu0 %1377
    %v1380 = vadd.f32 %v1374, %v1378
    %1382 = vrot.lane.b32.xlu0 %v1380, 104
    %v1383 = vpop.permute.xlu0 %1382
    %vm1385 = vcmask 976768
    %1386 = vst.msk [vmem:[#allocation5] sm:$0x3] %vm1385, %v1383
    %v1387 = vld [vmem:[#allocation4 + $0x1e] sm:$0x3]
    %v1388 = vld [vmem:[#allocation4 + $0x20] sm:$0x3]
    %1390 = vrot.lane.b32.xlu0 %v1388, 8
    %v1391 = vpop.permute.xlu0 %1390
    %v1393 = vadd.f32 %v1387, %v1391
    %1395 = vrot.lane.b32.xlu0 %v1393, 112
    %v1396 = vpop.permute.xlu0 %1395
    %vm1398 = vcmask 1042368
    %1399 = vst.msk [vmem:[#allocation5] sm:$0x3] %vm1398, %v1396
    // Predicated region
    $region18: #{filter_module_forward.1} parent=1 // pred_check
      _
    $region19: #{filter_module_forward.1} parent=1 // pred_check_branch
      %1401 = sbr.rel (0) target = $region21
    $region20: #{filter_module_forward.1} parent=1 // pred_region
      %s1403 = ssub.s32 32, 32
      %1404 = vsyncadd [#allocation6], %s1403
      %s1406 = sshll.u32 [#allocation5], 4
      %s1407 = int_to_ptr.vmem [resolvable:$true] %s1406
      %1409 = dma.vmem_to_hbm [thread:$0]  %s1407, 32, %s4, [#allocation6]
    $region21: #{filter_module_forward.1} parent=1 // pred_fallthru
      _
    // Predicated region
    $region22: #{filter_module_forward.1} parent=1 // pred_check
      _
    $region23: #{filter_module_forward.1} parent=1 // pred_check_branch
      %1411 = sbr.rel (0) target = $region25
    $region24: #{filter_module_forward.1} parent=1 // pred_region
      %1412 = dma.done [#allocation6], 32
    $region25: #{filter_module_forward.1} parent=1 // pred_fallthru
      _
    %1413 = vsyncpa [#allocation6], 1

</llo_original>
